<compile_context>
chip_gen: v6e
topology: v6e:2x2x1
jax: 0.10.0
libtpu: 0.0.40
codegen_flags: <defaults>
</compile_context>

<pallas_src>
import functools
import math

import jax
import jax.numpy as jnp
from jax.experimental import pallas as pl
from jax.experimental.pallas import tpu as pltpu


def _round_up(v, m):
    return ((v + m - 1) // m) * m


def _kan_linear_kernel(x_ref, grid_ref, bw_ref, spl_ref, o_ref, acc_ref, *,
                       spline_order):
    """One (batch-tile, out-tile, in-tile) grid step.

    x_ref   : (TB, TI)           input tile
    grid_ref: (G_total, TI)      knot vector per input feature
    bw_ref  : (TI, TO)           base_weight.T tile
    spl_ref : (n_coef*TI, TO)    fused, pre-scaled spline weight tile
    o_ref   : (TB, TO)           output tile (written on last IN tile)
    acc_ref : (TB, TO) f32       accumulator scratch across the IN axis
    """
    in_idx = pl.program_id(2)

    @pl.when(in_idx == 0)
    def _():
        acc_ref[...] = jnp.zeros_like(acc_ref)

    x = x_ref[...].astype(jnp.float32)                      # (TB, TI)
    g = grid_ref[...].astype(jnp.float32)                   # (G_total, TI)
    g_total = g.shape[0]

    # Hoist grid-row slices/broadcasts out of the unrolled recursion loops.
    g_rows = [g[j:j + 1, :] for j in range(g_total)]        # each (1, TI)

    # ---- base path: SiLU(x) @ base_weight.T (MXU) ----
    bw = bw_ref[...]
    silu_x = x * pl.reciprocal(1.0 + jnp.exp(-x))           # exact; EUP exp
    acc = jnp.dot(silu_x.astype(bw.dtype), bw,
                  preferred_element_type=jnp.float32)       # (TB, TO)

    # ---- B-spline bases (Cox–de Boor). Divides are replaced by batch-free
    #      reciprocal (1, TI) rows computed once per (j, k). ----
    bases = [
        jnp.logical_and(x >= g_rows[j], x < g_rows[j + 1]).astype(jnp.float32)
        for j in range(g_total - 1)
    ]
    for k in range(1, spline_order + 1):
        new_bases = []
        for j in range(len(bases) - 1):
            inv_dl = 1.0 / (g_rows[j + k] - g_rows[j])            # (1, TI)
            inv_dr = 1.0 / (g_rows[j + k + 1] - g_rows[j + 1])    # (1, TI)
            left = (x - g_rows[j]) * inv_dl
            right = (g_rows[j + k + 1] - x) * inv_dr
            new_bases.append(left * bases[j] + right * bases[j + 1])
        bases = new_bases
    # len(bases) == n_coef == grid_size + spline_order

    # ---- spline path: single fused MXU matmul (TB, n_coef*TI) @ (n_coef*TI, TO)
    spl = spl_ref[...]
    basis_cat = jnp.concatenate(bases, axis=1).astype(spl.dtype)
    acc = acc + jnp.dot(basis_cat, spl, preferred_element_type=jnp.float32)

    acc_ref[...] += acc

    @pl.when(in_idx == pl.num_programs(2) - 1)
    def _():
        o_ref[...] = acc_ref[...].astype(o_ref.dtype)


def prepare_kan_params(grid, base_weight, spline_weight, spline_scaler, *,
                       tile_in=128, tile_out=128, weight_dtype=jnp.float32):
    """One-time parameter prep: scaler folding, transpose, padding, tile layout.

    grid          : (IN, G_total)           G_total = grid_size + 2*spline_order + 1
    base_weight   : (OUT, IN)
    spline_weight : (OUT, IN, n_coef)       n_coef = grid_size + spline_order
    spline_scaler : (OUT, IN)
    """
    out_f, in_f, n_coef = spline_weight.shape
    g_total = grid.shape[1]
    spline_order = g_total - 1 - n_coef

    ti = min(_round_up(in_f, 128), tile_in)       # lane-aligned IN tile
    to = min(_round_up(out_f, 128), tile_out)     # lane-dense OUT tile
    in_pad = _round_up(in_f, ti)
    out_pad = _round_up(out_f, to)
    n_in_tiles = in_pad // ti

    # Fold the standalone spline scaler into the spline weight once.
    scaled = (spline_weight * spline_scaler[:, :, None]).astype(jnp.float32)
    spl = jnp.transpose(scaled, (2, 1, 0))                         # (n_coef, IN, OUT)
    spl = jnp.pad(spl, ((0, 0), (0, in_pad - in_f), (0, out_pad - out_f)))
    # Pre-arrange to (n_in_tiles, n_coef*ti, out_pad): row j*ti + t of in-tile
    # `it` holds scaled_spline[:, it*ti + t, j] -> one fused matmul in-kernel.
    spl = spl.reshape(n_coef, n_in_tiles, ti, out_pad)
    spl = jnp.transpose(spl, (1, 0, 2, 3)).reshape(n_in_tiles, n_coef * ti, out_pad)
    spl = spl.astype(weight_dtype)

    bw = jnp.pad(base_weight.T.astype(jnp.float32),
                 ((0, in_pad - in_f), (0, out_pad - out_f))).astype(weight_dtype)

    # Pad knot grid along IN with edge values so padded lanes keep a valid
    # monotonic knot vector (no 0/0 in the recursion); their weights are zero.
    grid_t = jnp.pad(grid.T.astype(jnp.float32),
                     ((0, 0), (0, in_pad - in_f)), mode="edge")    # (G_total, IN_pad)

    return dict(grid_t=grid_t, bw=bw, spl=spl,
                in_features=in_f, out_features=out_f,
                in_padded=in_pad, out_padded=out_pad,
                tile_in=ti, tile_out=to,
                n_coef=n_coef, g_total=g_total, spline_order=spline_order)


def kan_linear_forward(x, params, *, tile_batch=128):
    """Pallas-backed KANLinear.forward for a 2-D input (B, in_features)."""
    b, in_f = x.shape
    assert in_f == params["in_features"]

    ti, to = params["tile_in"], params["tile_out"]
    in_pad, out_pad = params["in_padded"], params["out_padded"]
    n_coef, g_total = params["n_coef"], params["g_total"]
    spline_order = params["spline_order"]

    tb = min(_round_up(b, 8), tile_batch)
    b_pad = _round_up(b, tb)

    x_p = jnp.pad(x.astype(jnp.float32), ((0, b_pad - b), (0, in_pad - in_f)))

    grid_dims = (b_pad // tb, out_pad // to, in_pad // ti)

    w_bytes = (params["bw"].size * params["bw"].dtype.itemsize
               + params["spl"].size * params["spl"].dtype.itemsize)
    cost = pl.CostEstimate(
        flops=2 * b_pad * (n_coef + 1) * in_pad * out_pad,
        transcendentals=b_pad * in_pad,
        bytes_accessed=int(x_p.size * 4 + params["grid_t"].size * 4
                           + w_bytes + b_pad * out_pad * 4),
    )

    kernel = functools.partial(_kan_linear_kernel, spline_order=spline_order)

    out = pl.pallas_call(
        kernel,
        out_shape=jax.ShapeDtypeStruct((b_pad, out_pad), x.dtype),
        grid=grid_dims,
        in_specs=[
            pl.BlockSpec((tb, ti), lambda bi, oi, ii: (bi, ii)),         # x
            pl.BlockSpec((g_total, ti), lambda bi, oi, ii: (0, ii)),     # knot grid
            pl.BlockSpec((ti, to), lambda bi, oi, ii: (ii, oi)),         # base W.T
            pl.BlockSpec((None, n_coef * ti, to),
                         lambda bi, oi, ii: (ii, 0, oi)),                # spline W
        ],
        out_specs=pl.BlockSpec((tb, to), lambda bi, oi, ii: (bi, oi)),
        scratch_shapes=[pltpu.VMEM((tb, to), jnp.float32)],
        compiler_params=pltpu.CompilerParams(
            dimension_semantics=("parallel", "parallel", "arbitrary")),
        cost_estimate=cost,
    )(x_p, params["grid_t"], params["bw"], params["spl"])

    return out[:b, :params["out_features"]]


def _reference_forward(x, grid, base_weight, spline_weight, spline_scaler,
                       spline_order):
    """Pure-JAX reference matching the PyTorch forward semantics."""
    base = jax.nn.silu(x) @ base_weight.T
    xg = x[:, :, None]
    gb = grid[None, :, :]
    bases = jnp.logical_and(xg >= gb[:, :, :-1], xg < gb[:, :, 1:]).astype(x.dtype)
    for k in range(1, spline_order + 1):
        bases = ((xg - gb[:, :, :-(k + 1)])
                 / (gb[:, :, k:-1] - gb[:, :, :-(k + 1)]) * bases[:, :, :-1]
                 + (gb[:, :, k + 1:] - xg)
                 / (gb[:, :, k + 1:] - gb[:, :, 1:-k]) * bases[:, :, 1:])
    scaled = spline_weight * spline_scaler[:, :, None]
    spline_out = bases.reshape(x.shape[0], -1) @ scaled.reshape(scaled.shape[0], -1).T
    return base + spline_out


if __name__ == "__main__":
    # TODO(synk): PyTorch's reset_parameters uses kaiming_uniform + an lstsq-based
    # curve2coeff init; here parameters are simple deterministic uniform draws.
    def make_case(key, batch, in_features, out_features, grid_size, spline_order,
                  grid_range=(-1.0, 1.0)):
        k_x, k_bw, k_sw, k_ss = jax.random.split(key, 4)
        h = (grid_range[1] - grid_range[0]) / grid_size
        g = (jnp.arange(-spline_order, grid_size + spline_order + 1,
                        dtype=jnp.float32) * h + grid_range[0])
        g = jnp.broadcast_to(g, (in_features, g.shape[0]))        # (IN, G_total)
        bound = 1.0 / math.sqrt(in_features)
        base_w = jax.random.uniform(k_bw, (out_features, in_features),
                                    jnp.float32, -bound, bound)
        spline_w = jax.random.uniform(
            k_sw, (out_features, in_features, grid_size + spline_order),
            jnp.float32, -bound, bound)
        spline_s = jax.random.uniform(k_ss, (out_features, in_features),
                                      jnp.float32, -bound, bound)
        x = jax.random.uniform(k_x, (batch, in_features), jnp.float32, -1.0, 1.0)
        return x, g, base_w, spline_w, spline_s

    key = jax.random.PRNGKey(0)
    k1, k2 = jax.random.split(key)

    # Case 1: small single-tile layer, f32 weights -> tight check.
    x1, g1, bw1, sw1, ss1 = make_case(k1, batch=8, in_features=32, out_features=16,
                                      grid_size=5, spline_order=3)
    p1 = prepare_kan_params(g1, bw1, sw1, ss1)
    o1 = jax.block_until_ready(kan_linear_forward(x1, p1))
    r1 = _reference_forward(x1, g1, bw1, sw1, ss1, spline_order=3)
    assert o1.shape == (8, 16)
    assert jnp.allclose(o1, r1, atol=1e-5, rtol=1e-5), "f32 case 1 mismatch"

    # Case 2: multiple IN and OUT tiles (exercises accumulator + tiling), f32.
    x2, g2, bw2, sw2, ss2 = make_case(k2, batch=40, in_features=200,
                                      out_features=200, grid_size=5, spline_order=3)
    p2 = prepare_kan_params(g2, bw2, sw2, ss2)
    o2 = jax.block_until_ready(kan_linear_forward(x2, p2))
    r2 = _reference_forward(x2, g2, bw2, sw2, ss2, spline_order=3)
    assert o2.shape == (40, 200)
    assert jnp.allclose(o2, r2, atol=1e-4, rtol=1e-4), "f32 case 2 mismatch"

    # Case 3: same layer with bf16 weight storage / bf16 MXU operands,
    # f32 accumulation -> looser tolerance.
    p3 = prepare_kan_params(g2, bw2, sw2, ss2, weight_dtype=jnp.bfloat16)
    o3 = jax.block_until_ready(kan_linear_forward(x2, p3))
    assert jnp.allclose(o3, r2, atol=2e-2, rtol=2e-2), "bf16 case mismatch"

    print("KERNEL_OK")
</pallas_src>

<mosaic_0001>
module attributes {stable_mosaic.version = 11 : i64} {
  func.func @_kan_linear_kernel(%arg0: i32, %arg1: i32, %arg2: i32, %arg3: memref<8x128xf32, #tpu.memory_space<vmem>>, %arg4: memref<12x128xf32, #tpu.memory_space<vmem>>, %arg5: memref<128x128xf32, #tpu.memory_space<vmem>>, %arg6: memref<1x1024x128xf32, #tpu.memory_space<vmem>>, %arg7: memref<8x128xf32, #tpu.memory_space<vmem>>, %arg8: memref<8x128xf32, #tpu.memory_space<vmem>>) attributes {dimension_semantics = [#tpu.dimension_semantics<parallel>, #tpu.dimension_semantics<parallel>, #tpu.dimension_semantics<arbitrary>], iteration_bounds = array<i64: 1, 1, 1>, scalar_prefetch = 0 : i64, scratch_operands = 1 : i64, tpu.core_type = #tpu.core_type<tc>, window_params = [{transform_indices = @transform_0, window_bounds = array<i64: 8, 128>}, {transform_indices = @transform_1, window_bounds = array<i64: 12, 128>}, {transform_indices = @transform_2, window_bounds = array<i64: 128, 128>}, {transform_indices = @transform_3, window_bounds = array<i64: 1, 1024, 128>}, {transform_indices = @transform_4, window_bounds = array<i64: 8, 128>}]} {
    %c0_i32 = arith.constant 0 : i32
    %0 = arith.cmpi eq, %arg2, %c0_i32 : i32
    %1 = arith.extui %0 : i1 to i32
    %c0_i32_0 = arith.constant 0 : i32
    %2 = arith.cmpi ne, %1, %c0_i32_0 : i32
    scf.if %2 {
      %cst_72 = arith.constant 0.000000e+00 : f32
      %573 = vector.broadcast %cst_72 : f32 to vector<8x128xf32>
      %c0_73 = arith.constant 0 : index
      %c0_74 = arith.constant 0 : index
      %574 = vector.load %arg8[%c0_73, %c0_74] : memref<8x128xf32, #tpu.memory_space<vmem>>, vector<8x128xf32>
      tpu.vector_store %arg8[%c0_73, %c0_74], %573 {strides = array<i32>} : memref<8x128xf32, #tpu.memory_space<vmem>>, vector<8x128xf32>,
    } else {
    }
    %c0 = arith.constant 0 : index
    %c0_1 = arith.constant 0 : index
    %3 = vector.load %arg3[%c0, %c0_1] : memref<8x128xf32, #tpu.memory_space<vmem>>, vector<8x128xf32>
    %c0_2 = arith.constant 0 : index
    %c0_3 = arith.constant 0 : index
    %4 = vector.load %arg4[%c0_2, %c0_3] : memref<12x128xf32, #tpu.memory_space<vmem>>, vector<12x128xf32>
    %5 = vector.extract_strided_slice %4 {offsets = [0, 0], sizes = [1, 128], strides = [1, 1]} : vector<12x128xf32> to vector<1x128xf32>
    %6 = vector.extract_strided_slice %4 {offsets = [1, 0], sizes = [1, 128], strides = [1, 1]} : vector<12x128xf32> to vector<1x128xf32>
    %7 = vector.extract_strided_slice %4 {offsets = [2, 0], sizes = [1, 128], strides = [1, 1]} : vector<12x128xf32> to vector<1x128xf32>
    %8 = vector.extract_strided_slice %4 {offsets = [3, 0], sizes = [1, 128], strides = [1, 1]} : vector<12x128xf32> to vector<1x128xf32>
    %9 = vector.extract_strided_slice %4 {offsets = [4, 0], sizes = [1, 128], strides = [1, 1]} : vector<12x128xf32> to vector<1x128xf32>
    %10 = vector.extract_strided_slice %4 {offsets = [5, 0], sizes = [1, 128], strides = [1, 1]} : vector<12x128xf32> to vector<1x128xf32>
    %11 = vector.extract_strided_slice %4 {offsets = [6, 0], sizes = [1, 128], strides = [1, 1]} : vector<12x128xf32> to vector<1x128xf32>
    %12 = vector.extract_strided_slice %4 {offsets = [7, 0], sizes = [1, 128], strides = [1, 1]} : vector<12x128xf32> to vector<1x128xf32>
    %13 = vector.extract_strided_slice %4 {offsets = [8, 0], sizes = [1, 128], strides = [1, 1]} : vector<12x128xf32> to vector<1x128xf32>
    %14 = vector.extract_strided_slice %4 {offsets = [9, 0], sizes = [1, 128], strides = [1, 1]} : vector<12x128xf32> to vector<1x128xf32>
    %15 = vector.extract_strided_slice %4 {offsets = [10, 0], sizes = [1, 128], strides = [1, 1]} : vector<12x128xf32> to vector<1x128xf32>
    %16 = vector.extract_strided_slice %4 {offsets = [11, 0], sizes = [1, 128], strides = [1, 1]} : vector<12x128xf32> to vector<1x128xf32>
    %c0_4 = arith.constant 0 : index
    %c0_5 = arith.constant 0 : index
    %17 = vector.load %arg5[%c0_4, %c0_5] : memref<128x128xf32, #tpu.memory_space<vmem>>, vector<128x128xf32>
    %cst = arith.constant 0.000000e+00 : f32
    %18 = vector.broadcast %cst : f32 to vector<8x128xf32>
    %19 = arith.subf %18, %3 : vector<8x128xf32>
    %20 = math.exp %19 : vector<8x128xf32>
    %cst_6 = arith.constant 1.000000e+00 : f32
    %21 = vector.broadcast %cst_6 : f32 to vector<8x128xf32>
    %22 = arith.addf %21, %20 : vector<8x128xf32>
    %23 = tpu.reciprocal %22 : vector<8x128xf32> -> vector<8x128xf32>
    %24 = arith.mulf %3, %23 : vector<8x128xf32>
    %cst_7 = arith.constant dense<0.000000e+00> : vector<8x128xf32>
    %25 = tpu.matmul %24, %17, %cst_7 {dimension_numbers = #tpu.dot_dimension_numbers<[1], [0], [0], [1], [0, 0, 1, 1], [], []>} : vector<8x128xf32>, vector<128x128xf32>, vector<8x128xf32> -> vector<8x128xf32>
    %26 = vector.broadcast %5 : vector<1x128xf32> to vector<8x128xf32>
    %27 = arith.cmpf oge, %3, %26 : vector<8x128xf32>
    %28 = vector.broadcast %6 : vector<1x128xf32> to vector<8x128xf32>
    %29 = arith.cmpf olt, %3, %28 : vector<8x128xf32>
    %30 = arith.andi %27, %29 : vector<8x128xi1>
    %31 = arith.extui %30 : vector<8x128xi1> to vector<8x128xi32>
    %32 = arith.sitofp %31 : vector<8x128xi32> to vector<8x128xf32>
    %33 = vector.broadcast %6 : vector<1x128xf32> to vector<8x128xf32>
    %34 = arith.cmpf oge, %3, %33 : vector<8x128xf32>
    %35 = vector.broadcast %7 : vector<1x128xf32> to vector<8x128xf32>
    %36 = arith.cmpf olt, %3, %35 : vector<8x128xf32>
    %37 = arith.andi %34, %36 : vector<8x128xi1>
    %38 = arith.extui %37 : vector<8x128xi1> to vector<8x128xi32>
    %39 = arith.sitofp %38 : vector<8x128xi32> to vector<8x128xf32>
    %40 = vector.broadcast %7 : vector<1x128xf32> to vector<8x128xf32>
    %41 = arith.cmpf oge, %3, %40 : vector<8x128xf32>
    %42 = vector.broadcast %8 : vector<1x128xf32> to vector<8x128xf32>
    %43 = arith.cmpf olt, %3, %42 : vector<8x128xf32>
    %44 = arith.andi %41, %43 : vector<8x128xi1>
    %45 = arith.extui %44 : vector<8x128xi1> to vector<8x128xi32>
    %46 = arith.sitofp %45 : vector<8x128xi32> to vector<8x128xf32>
    %47 = vector.broadcast %8 : vector<1x128xf32> to vector<8x128xf32>
    %48 = arith.cmpf oge, %3, %47 : vector<8x128xf32>
    %49 = vector.broadcast %9 : vector<1x128xf32> to vector<8x128xf32>
    %50 = arith.cmpf olt, %3, %49 : vector<8x128xf32>
    %51 = arith.andi %48, %50 : vector<8x128xi1>
    %52 = arith.extui %51 : vector<8x128xi1> to vector<8x128xi32>
    %53 = arith.sitofp %52 : vector<8x128xi32> to vector<8x128xf32>
    %54 = vector.broadcast %9 : vector<1x128xf32> to vector<8x128xf32>
    %55 = arith.cmpf oge, %3, %54 : vector<8x128xf32>
    %56 = vector.broadcast %10 : vector<1x128xf32> to vector<8x128xf32>
    %57 = arith.cmpf olt, %3, %56 : vector<8x128xf32>
    %58 = arith.andi %55, %57 : vector<8x128xi1>
    %59 = arith.extui %58 : vector<8x128xi1> to vector<8x128xi32>
    %60 = arith.sitofp %59 : vector<8x128xi32> to vector<8x128xf32>
    %61 = vector.broadcast %10 : vector<1x128xf32> to vector<8x128xf32>
    %62 = arith.cmpf oge, %3, %61 : vector<8x128xf32>
    %63 = vector.broadcast %11 : vector<1x128xf32> to vector<8x128xf32>
    %64 = arith.cmpf olt, %3, %63 : vector<8x128xf32>
    %65 = arith.andi %62, %64 : vector<8x128xi1>
    %66 = arith.extui %65 : vector<8x128xi1> to vector<8x128xi32>
    %67 = arith.sitofp %66 : vector<8x128xi32> to vector<8x128xf32>
    %68 = vector.broadcast %11 : vector<1x128xf32> to vector<8x128xf32>
    %69 = arith.cmpf oge, %3, %68 : vector<8x128xf32>
    %70 = vector.broadcast %12 : vector<1x128xf32> to vector<8x128xf32>
    %71 = arith.cmpf olt, %3, %70 : vector<8x128xf32>
    %72 = arith.andi %69, %71 : vector<8x128xi1>
    %73 = arith.extui %72 : vector<8x128xi1> to vector<8x128xi32>
    %74 = arith.sitofp %73 : vector<8x128xi32> to vector<8x128xf32>
    %75 = vector.broadcast %12 : vector<1x128xf32> to vector<8x128xf32>
    %76 = arith.cmpf oge, %3, %75 : vector<8x128xf32>
    %77 = vector.broadcast %13 : vector<1x128xf32> to vector<8x128xf32>
    %78 = arith.cmpf olt, %3, %77 : vector<8x128xf32>
    %79 = arith.andi %76, %78 : vector<8x128xi1>
    %80 = arith.extui %79 : vector<8x128xi1> to vector<8x128xi32>
    %81 = arith.sitofp %80 : vector<8x128xi32> to vector<8x128xf32>
    %82 = vector.broadcast %13 : vector<1x128xf32> to vector<8x128xf32>
    %83 = arith.cmpf oge, %3, %82 : vector<8x128xf32>
    %84 = vector.broadcast %14 : vector<1x128xf32> to vector<8x128xf32>
    %85 = arith.cmpf olt, %3, %84 : vector<8x128xf32>
    %86 = arith.andi %83, %85 : vector<8x128xi1>
    %87 = arith.extui %86 : vector<8x128xi1> to vector<8x128xi32>
    %88 = arith.sitofp %87 : vector<8x128xi32> to vector<8x128xf32>
    %89 = vector.broadcast %14 : vector<1x128xf32> to vector<8x128xf32>
    %90 = arith.cmpf oge, %3, %89 : vector<8x128xf32>
    %91 = vector.broadcast %15 : vector<1x128xf32> to vector<8x128xf32>
    %92 = arith.cmpf olt, %3, %91 : vector<8x128xf32>
    %93 = arith.andi %90, %92 : vector<8x128xi1>
    %94 = arith.extui %93 : vector<8x128xi1> to vector<8x128xi32>
    %95 = arith.sitofp %94 : vector<8x128xi32> to vector<8x128xf32>
    %96 = vector.broadcast %15 : vector<1x128xf32> to vector<8x128xf32>
    %97 = arith.cmpf oge, %3, %96 : vector<8x128xf32>
    %98 = vector.broadcast %16 : vector<1x128xf32> to vector<8x128xf32>
    %99 = arith.cmpf olt, %3, %98 : vector<8x128xf32>
    %100 = arith.andi %97, %99 : vector<8x128xi1>
    %101 = arith.extui %100 : vector<8x128xi1> to vector<8x128xi32>
    %102 = arith.sitofp %101 : vector<8x128xi32> to vector<8x128xf32>
    %103 = arith.subf %6, %5 : vector<1x128xf32>
    %cst_8 = arith.constant 1.000000e+00 : f32
    %104 = vector.broadcast %cst_8 : f32 to vector<1x128xf32>
    %105 = arith.divf %104, %103 : vector<1x128xf32>
    %106 = arith.subf %7, %6 : vector<1x128xf32>
    %cst_9 = arith.constant 1.000000e+00 : f32
    %107 = vector.broadcast %cst_9 : f32 to vector<1x128xf32>
    %108 = arith.divf %107, %106 : vector<1x128xf32>
    %109 = vector.broadcast %5 : vector<1x128xf32> to vector<8x128xf32>
    %110 = arith.subf %3, %109 : vector<8x128xf32>
    %111 = vector.broadcast %105 : vector<1x128xf32> to vector<8x128xf32>
    %112 = arith.mulf %110, %111 : vector<8x128xf32>
    %113 = vector.broadcast %7 : vector<1x128xf32> to vector<8x128xf32>
    %114 = arith.subf %113, %3 : vector<8x128xf32>
    %115 = vector.broadcast %108 : vector<1x128xf32> to vector<8x128xf32>
    %116 = arith.mulf %114, %115 : vector<8x128xf32>
    %117 = arith.mulf %112, %32 : vector<8x128xf32>
    %118 = arith.mulf %116, %39 : vector<8x128xf32>
    %119 = arith.addf %117, %118 : vector<8x128xf32>
    %120 = arith.subf %7, %6 : vector<1x128xf32>
    %cst_10 = arith.constant 1.000000e+00 : f32
    %121 = vector.broadcast %cst_10 : f32 to vector<1x128xf32>
    %122 = arith.divf %121, %120 : vector<1x128xf32>
    %123 = arith.subf %8, %7 : vector<1x128xf32>
    %cst_11 = arith.constant 1.000000e+00 : f32
    %124 = vector.broadcast %cst_11 : f32 to vector<1x128xf32>
    %125 = arith.divf %124, %123 : vector<1x128xf32>
    %126 = vector.broadcast %6 : vector<1x128xf32> to vector<8x128xf32>
    %127 = arith.subf %3, %126 : vector<8x128xf32>
    %128 = vector.broadcast %122 : vector<1x128xf32> to vector<8x128xf32>
    %129 = arith.mulf %127, %128 : vector<8x128xf32>
    %130 = vector.broadcast %8 : vector<1x128xf32> to vector<8x128xf32>
    %131 = arith.subf %130, %3 : vector<8x128xf32>
    %132 = vector.broadcast %125 : vector<1x128xf32> to vector<8x128xf32>
    %133 = arith.mulf %131, %132 : vector<8x128xf32>
    %134 = arith.mulf %129, %39 : vector<8x128xf32>
    %135 = arith.mulf %133, %46 : vector<8x128xf32>
    %136 = arith.addf %134, %135 : vector<8x128xf32>
    %137 = arith.subf %8, %7 : vector<1x128xf32>
    %cst_12 = arith.constant 1.000000e+00 : f32
    %138 = vector.broadcast %cst_12 : f32 to vector<1x128xf32>
    %139 = arith.divf %138, %137 : vector<1x128xf32>
    %140 = arith.subf %9, %8 : vector<1x128xf32>
    %cst_13 = arith.constant 1.000000e+00 : f32
    %141 = vector.broadcast %cst_13 : f32 to vector<1x128xf32>
    %142 = arith.divf %141, %140 : vector<1x128xf32>
    %143 = vector.broadcast %7 : vector<1x128xf32> to vector<8x128xf32>
    %144 = arith.subf %3, %143 : vector<8x128xf32>
    %145 = vector.broadcast %139 : vector<1x128xf32> to vector<8x128xf32>
    %146 = arith.mulf %144, %145 : vector<8x128xf32>
    %147 = vector.broadcast %9 : vector<1x128xf32> to vector<8x128xf32>
    %148 = arith.subf %147, %3 : vector<8x128xf32>
    %149 = vector.broadcast %142 : vector<1x128xf32> to vector<8x128xf32>
    %150 = arith.mulf %148, %149 : vector<8x128xf32>
    %151 = arith.mulf %146, %46 : vector<8x128xf32>
    %152 = arith.mulf %150, %53 : vector<8x128xf32>
    %153 = arith.addf %151, %152 : vector<8x128xf32>
    %154 = arith.subf %9, %8 : vector<1x128xf32>
    %cst_14 = arith.constant 1.000000e+00 : f32
    %155 = vector.broadcast %cst_14 : f32 to vector<1x128xf32>
    %156 = arith.divf %155, %154 : vector<1x128xf32>
    %157 = arith.subf %10, %9 : vector<1x128xf32>
    %cst_15 = arith.constant 1.000000e+00 : f32
    %158 = vector.broadcast %cst_15 : f32 to vector<1x128xf32>
    %159 = arith.divf %158, %157 : vector<1x128xf32>
    %160 = vector.broadcast %8 : vector<1x128xf32> to vector<8x128xf32>
    %161 = arith.subf %3, %160 : vector<8x128xf32>
    %162 = vector.broadcast %156 : vector<1x128xf32> to vector<8x128xf32>
    %163 = arith.mulf %161, %162 : vector<8x128xf32>
    %164 = vector.broadcast %10 : vector<1x128xf32> to vector<8x128xf32>
    %165 = arith.subf %164, %3 : vector<8x128xf32>
    %166 = vector.broadcast %159 : vector<1x128xf32> to vector<8x128xf32>
    %167 = arith.mulf %165, %166 : vector<8x128xf32>
    %168 = arith.mulf %163, %53 : vector<8x128xf32>
    %169 = arith.mulf %167, %60 : vector<8x128xf32>
    %170 = arith.addf %168, %169 : vector<8x128xf32>
    %171 = arith.subf %10, %9 : vector<1x128xf32>
    %cst_16 = arith.constant 1.000000e+00 : f32
    %172 = vector.broadcast %cst_16 : f32 to vector<1x128xf32>
    %173 = arith.divf %172, %171 : vector<1x128xf32>
    %174 = arith.subf %11, %10 : vector<1x128xf32>
    %cst_17 = arith.constant 1.000000e+00 : f32
    %175 = vector.broadcast %cst_17 : f32 to vector<1x128xf32>
    %176 = arith.divf %175, %174 : vector<1x128xf32>
    %177 = vector.broadcast %9 : vector<1x128xf32> to vector<8x128xf32>
    %178 = arith.subf %3, %177 : vector<8x128xf32>
    %179 = vector.broadcast %173 : vector<1x128xf32> to vector<8x128xf32>
    %180 = arith.mulf %178, %179 : vector<8x128xf32>
    %181 = vector.broadcast %11 : vector<1x128xf32> to vector<8x128xf32>
    %182 = arith.subf %181, %3 : vector<8x128xf32>
    %183 = vector.broadcast %176 : vector<1x128xf32> to vector<8x128xf32>
    %184 = arith.mulf %182, %183 : vector<8x128xf32>
    %185 = arith.mulf %180, %60 : vector<8x128xf32>
    %186 = arith.mulf %184, %67 : vector<8x128xf32>
    %187 = arith.addf %185, %186 : vector<8x128xf32>
    %188 = arith.subf %11, %10 : vector<1x128xf32>
    %cst_18 = arith.constant 1.000000e+00 : f32
    %189 = vector.broadcast %cst_18 : f32 to vector<1x128xf32>
    %190 = arith.divf %189, %188 : vector<1x128xf32>
    %191 = arith.subf %12, %11 : vector<1x128xf32>
    %cst_19 = arith.constant 1.000000e+00 : f32
    %192 = vector.broadcast %cst_19 : f32 to vector<1x128xf32>
    %193 = arith.divf %192, %191 : vector<1x128xf32>
    %194 = vector.broadcast %10 : vector<1x128xf32> to vector<8x128xf32>
    %195 = arith.subf %3, %194 : vector<8x128xf32>
    %196 = vector.broadcast %190 : vector<1x128xf32> to vector<8x128xf32>
    %197 = arith.mulf %195, %196 : vector<8x128xf32>
    %198 = vector.broadcast %12 : vector<1x128xf32> to vector<8x128xf32>
    %199 = arith.subf %198, %3 : vector<8x128xf32>
    %200 = vector.broadcast %193 : vector<1x128xf32> to vector<8x128xf32>
    %201 = arith.mulf %199, %200 : vector<8x128xf32>
    %202 = arith.mulf %197, %67 : vector<8x128xf32>
    %203 = arith.mulf %201, %74 : vector<8x128xf32>
    %204 = arith.addf %202, %203 : vector<8x128xf32>
    %205 = arith.subf %12, %11 : vector<1x128xf32>
    %cst_20 = arith.constant 1.000000e+00 : f32
    %206 = vector.broadcast %cst_20 : f32 to vector<1x128xf32>
    %207 = arith.divf %206, %205 : vector<1x128xf32>
    %208 = arith.subf %13, %12 : vector<1x128xf32>
    %cst_21 = arith.constant 1.000000e+00 : f32
    %209 = vector.broadcast %cst_21 : f32 to vector<1x128xf32>
    %210 = arith.divf %209, %208 : vector<1x128xf32>
    %211 = vector.broadcast %11 : vector<1x128xf32> to vector<8x128xf32>
    %212 = arith.subf %3, %211 : vector<8x128xf32>
    %213 = vector.broadcast %207 : vector<1x128xf32> to vector<8x128xf32>
    %214 = arith.mulf %212, %213 : vector<8x128xf32>
    %215 = vector.broadcast %13 : vector<1x128xf32> to vector<8x128xf32>
    %216 = arith.subf %215, %3 : vector<8x128xf32>
    %217 = vector.broadcast %210 : vector<1x128xf32> to vector<8x128xf32>
    %218 = arith.mulf %216, %217 : vector<8x128xf32>
    %219 = arith.mulf %214, %74 : vector<8x128xf32>
    %220 = arith.mulf %218, %81 : vector<8x128xf32>
    %221 = arith.addf %219, %220 : vector<8x128xf32>
    %222 = arith.subf %13, %12 : vector<1x128xf32>
    %cst_22 = arith.constant 1.000000e+00 : f32
    %223 = vector.broadcast %cst_22 : f32 to vector<1x128xf32>
    %224 = arith.divf %223, %222 : vector<1x128xf32>
    %225 = arith.subf %14, %13 : vector<1x128xf32>
    %cst_23 = arith.constant 1.000000e+00 : f32
    %226 = vector.broadcast %cst_23 : f32 to vector<1x128xf32>
    %227 = arith.divf %226, %225 : vector<1x128xf32>
    %228 = vector.broadcast %12 : vector<1x128xf32> to vector<8x128xf32>
    %229 = arith.subf %3, %228 : vector<8x128xf32>
    %230 = vector.broadcast %224 : vector<1x128xf32> to vector<8x128xf32>
    %231 = arith.mulf %229, %230 : vector<8x128xf32>
    %232 = vector.broadcast %14 : vector<1x128xf32> to vector<8x128xf32>
    %233 = arith.subf %232, %3 : vector<8x128xf32>
    %234 = vector.broadcast %227 : vector<1x128xf32> to vector<8x128xf32>
    %235 = arith.mulf %233, %234 : vector<8x128xf32>
    %236 = arith.mulf %231, %81 : vector<8x128xf32>
    %237 = arith.mulf %235, %88 : vector<8x128xf32>
    %238 = arith.addf %236, %237 : vector<8x128xf32>
    %239 = arith.subf %14, %13 : vector<1x128xf32>
    %cst_24 = arith.constant 1.000000e+00 : f32
    %240 = vector.broadcast %cst_24 : f32 to vector<1x128xf32>
    %241 = arith.divf %240, %239 : vector<1x128xf32>
    %242 = arith.subf %15, %14 : vector<1x128xf32>
    %cst_25 = arith.constant 1.000000e+00 : f32
    %243 = vector.broadcast %cst_25 : f32 to vector<1x128xf32>
    %244 = arith.divf %243, %242 : vector<1x128xf32>
    %245 = vector.broadcast %13 : vector<1x128xf32> to vector<8x128xf32>
    %246 = arith.subf %3, %245 : vector<8x128xf32>
    %247 = vector.broadcast %241 : vector<1x128xf32> to vector<8x128xf32>
    %248 = arith.mulf %246, %247 : vector<8x128xf32>
    %249 = vector.broadcast %15 : vector<1x128xf32> to vector<8x128xf32>
    %250 = arith.subf %249, %3 : vector<8x128xf32>
    %251 = vector.broadcast %244 : vector<1x128xf32> to vector<8x128xf32>
    %252 = arith.mulf %250, %251 : vector<8x128xf32>
    %253 = arith.mulf %248, %88 : vector<8x128xf32>
    %254 = arith.mulf %252, %95 : vector<8x128xf32>
    %255 = arith.addf %253, %254 : vector<8x128xf32>
    %256 = arith.subf %15, %14 : vector<1x128xf32>
    %cst_26 = arith.constant 1.000000e+00 : f32
    %257 = vector.broadcast %cst_26 : f32 to vector<1x128xf32>
    %258 = arith.divf %257, %256 : vector<1x128xf32>
    %259 = arith.subf %16, %15 : vector<1x128xf32>
    %cst_27 = arith.constant 1.000000e+00 : f32
    %260 = vector.broadcast %cst_27 : f32 to vector<1x128xf32>
    %261 = arith.divf %260, %259 : vector<1x128xf32>
    %262 = vector.broadcast %14 : vector<1x128xf32> to vector<8x128xf32>
    %263 = arith.subf %3, %262 : vector<8x128xf32>
    %264 = vector.broadcast %258 : vector<1x128xf32> to vector<8x128xf32>
    %265 = arith.mulf %263, %264 : vector<8x128xf32>
    %266 = vector.broadcast %16 : vector<1x128xf32> to vector<8x128xf32>
    %267 = arith.subf %266, %3 : vector<8x128xf32>
    %268 = vector.broadcast %261 : vector<1x128xf32> to vector<8x128xf32>
    %269 = arith.mulf %267, %268 : vector<8x128xf32>
    %270 = arith.mulf %265, %95 : vector<8x128xf32>
    %271 = arith.mulf %269, %102 : vector<8x128xf32>
    %272 = arith.addf %270, %271 : vector<8x128xf32>
    %273 = arith.subf %7, %5 : vector<1x128xf32>
    %cst_28 = arith.constant 1.000000e+00 : f32
    %274 = vector.broadcast %cst_28 : f32 to vector<1x128xf32>
    %275 = arith.divf %274, %273 : vector<1x128xf32>
    %276 = arith.subf %8, %6 : vector<1x128xf32>
    %cst_29 = arith.constant 1.000000e+00 : f32
    %277 = vector.broadcast %cst_29 : f32 to vector<1x128xf32>
    %278 = arith.divf %277, %276 : vector<1x128xf32>
    %279 = vector.broadcast %5 : vector<1x128xf32> to vector<8x128xf32>
    %280 = arith.subf %3, %279 : vector<8x128xf32>
    %281 = vector.broadcast %275 : vector<1x128xf32> to vector<8x128xf32>
    %282 = arith.mulf %280, %281 : vector<8x128xf32>
    %283 = vector.broadcast %8 : vector<1x128xf32> to vector<8x128xf32>
    %284 = arith.subf %283, %3 : vector<8x128xf32>
    %285 = vector.broadcast %278 : vector<1x128xf32> to vector<8x128xf32>
    %286 = arith.mulf %284, %285 : vector<8x128xf32>
    %287 = arith.mulf %282, %119 : vector<8x128xf32>
    %288 = arith.mulf %286, %136 : vector<8x128xf32>
    %289 = arith.addf %287, %288 : vector<8x128xf32>
    %290 = arith.subf %8, %6 : vector<1x128xf32>
    %cst_30 = arith.constant 1.000000e+00 : f32
    %291 = vector.broadcast %cst_30 : f32 to vector<1x128xf32>
    %292 = arith.divf %291, %290 : vector<1x128xf32>
    %293 = arith.subf %9, %7 : vector<1x128xf32>
    %cst_31 = arith.constant 1.000000e+00 : f32
    %294 = vector.broadcast %cst_31 : f32 to vector<1x128xf32>
    %295 = arith.divf %294, %293 : vector<1x128xf32>
    %296 = vector.broadcast %6 : vector<1x128xf32> to vector<8x128xf32>
    %297 = arith.subf %3, %296 : vector<8x128xf32>
    %298 = vector.broadcast %292 : vector<1x128xf32> to vector<8x128xf32>
    %299 = arith.mulf %297, %298 : vector<8x128xf32>
    %300 = vector.broadcast %9 : vector<1x128xf32> to vector<8x128xf32>
    %301 = arith.subf %300, %3 : vector<8x128xf32>
    %302 = vector.broadcast %295 : vector<1x128xf32> to vector<8x128xf32>
    %303 = arith.mulf %301, %302 : vector<8x128xf32>
    %304 = arith.mulf %299, %136 : vector<8x128xf32>
    %305 = arith.mulf %303, %153 : vector<8x128xf32>
    %306 = arith.addf %304, %305 : vector<8x128xf32>
    %307 = arith.subf %9, %7 : vector<1x128xf32>
    %cst_32 = arith.constant 1.000000e+00 : f32
    %308 = vector.broadcast %cst_32 : f32 to vector<1x128xf32>
    %309 = arith.divf %308, %307 : vector<1x128xf32>
    %310 = arith.subf %10, %8 : vector<1x128xf32>
    %cst_33 = arith.constant 1.000000e+00 : f32
    %311 = vector.broadcast %cst_33 : f32 to vector<1x128xf32>
    %312 = arith.divf %311, %310 : vector<1x128xf32>
    %313 = vector.broadcast %7 : vector<1x128xf32> to vector<8x128xf32>
    %314 = arith.subf %3, %313 : vector<8x128xf32>
    %315 = vector.broadcast %309 : vector<1x128xf32> to vector<8x128xf32>
    %316 = arith.mulf %314, %315 : vector<8x128xf32>
    %317 = vector.broadcast %10 : vector<1x128xf32> to vector<8x128xf32>
    %318 = arith.subf %317, %3 : vector<8x128xf32>
    %319 = vector.broadcast %312 : vector<1x128xf32> to vector<8x128xf32>
    %320 = arith.mulf %318, %319 : vector<8x128xf32>
    %321 = arith.mulf %316, %153 : vector<8x128xf32>
    %322 = arith.mulf %320, %170 : vector<8x128xf32>
    %323 = arith.addf %321, %322 : vector<8x128xf32>
    %324 = arith.subf %10, %8 : vector<1x128xf32>
    %cst_34 = arith.constant 1.000000e+00 : f32
    %325 = vector.broadcast %cst_34 : f32 to vector<1x128xf32>
    %326 = arith.divf %325, %324 : vector<1x128xf32>
    %327 = arith.subf %11, %9 : vector<1x128xf32>
    %cst_35 = arith.constant 1.000000e+00 : f32
    %328 = vector.broadcast %cst_35 : f32 to vector<1x128xf32>
    %329 = arith.divf %328, %327 : vector<1x128xf32>
    %330 = vector.broadcast %8 : vector<1x128xf32> to vector<8x128xf32>
    %331 = arith.subf %3, %330 : vector<8x128xf32>
    %332 = vector.broadcast %326 : vector<1x128xf32> to vector<8x128xf32>
    %333 = arith.mulf %331, %332 : vector<8x128xf32>
    %334 = vector.broadcast %11 : vector<1x128xf32> to vector<8x128xf32>
    %335 = arith.subf %334, %3 : vector<8x128xf32>
    %336 = vector.broadcast %329 : vector<1x128xf32> to vector<8x128xf32>
    %337 = arith.mulf %335, %336 : vector<8x128xf32>
    %338 = arith.mulf %333, %170 : vector<8x128xf32>
    %339 = arith.mulf %337, %187 : vector<8x128xf32>
    %340 = arith.addf %338, %339 : vector<8x128xf32>
    %341 = arith.subf %11, %9 : vector<1x128xf32>
    %cst_36 = arith.constant 1.000000e+00 : f32
    %342 = vector.broadcast %cst_36 : f32 to vector<1x128xf32>
    %343 = arith.divf %342, %341 : vector<1x128xf32>
    %344 = arith.subf %12, %10 : vector<1x128xf32>
    %cst_37 = arith.constant 1.000000e+00 : f32
    %345 = vector.broadcast %cst_37 : f32 to vector<1x128xf32>
    %346 = arith.divf %345, %344 : vector<1x128xf32>
    %347 = vector.broadcast %9 : vector<1x128xf32> to vector<8x128xf32>
    %348 = arith.subf %3, %347 : vector<8x128xf32>
    %349 = vector.broadcast %343 : vector<1x128xf32> to vector<8x128xf32>
    %350 = arith.mulf %348, %349 : vector<8x128xf32>
    %351 = vector.broadcast %12 : vector<1x128xf32> to vector<8x128xf32>
    %352 = arith.subf %351, %3 : vector<8x128xf32>
    %353 = vector.broadcast %346 : vector<1x128xf32> to vector<8x128xf32>
    %354 = arith.mulf %352, %353 : vector<8x128xf32>
    %355 = arith.mulf %350, %187 : vector<8x128xf32>
    %356 = arith.mulf %354, %204 : vector<8x128xf32>
    %357 = arith.addf %355, %356 : vector<8x128xf32>
    %358 = arith.subf %12, %10 : vector<1x128xf32>
    %cst_38 = arith.constant 1.000000e+00 : f32
    %359 = vector.broadcast %cst_38 : f32 to vector<1x128xf32>
    %360 = arith.divf %359, %358 : vector<1x128xf32>
    %361 = arith.subf %13, %11 : vector<1x128xf32>
    %cst_39 = arith.constant 1.000000e+00 : f32
    %362 = vector.broadcast %cst_39 : f32 to vector<1x128xf32>
    %363 = arith.divf %362, %361 : vector<1x128xf32>
    %364 = vector.broadcast %10 : vector<1x128xf32> to vector<8x128xf32>
    %365 = arith.subf %3, %364 : vector<8x128xf32>
    %366 = vector.broadcast %360 : vector<1x128xf32> to vector<8x128xf32>
    %367 = arith.mulf %365, %366 : vector<8x128xf32>
    %368 = vector.broadcast %13 : vector<1x128xf32> to vector<8x128xf32>
    %369 = arith.subf %368, %3 : vector<8x128xf32>
    %370 = vector.broadcast %363 : vector<1x128xf32> to vector<8x128xf32>
    %371 = arith.mulf %369, %370 : vector<8x128xf32>
    %372 = arith.mulf %367, %204 : vector<8x128xf32>
    %373 = arith.mulf %371, %221 : vector<8x128xf32>
    %374 = arith.addf %372, %373 : vector<8x128xf32>
    %375 = arith.subf %13, %11 : vector<1x128xf32>
    %cst_40 = arith.constant 1.000000e+00 : f32
    %376 = vector.broadcast %cst_40 : f32 to vector<1x128xf32>
    %377 = arith.divf %376, %375 : vector<1x128xf32>
    %378 = arith.subf %14, %12 : vector<1x128xf32>
    %cst_41 = arith.constant 1.000000e+00 : f32
    %379 = vector.broadcast %cst_41 : f32 to vector<1x128xf32>
    %380 = arith.divf %379, %378 : vector<1x128xf32>
    %381 = vector.broadcast %11 : vector<1x128xf32> to vector<8x128xf32>
    %382 = arith.subf %3, %381 : vector<8x128xf32>
    %383 = vector.broadcast %377 : vector<1x128xf32> to vector<8x128xf32>
    %384 = arith.mulf %382, %383 : vector<8x128xf32>
    %385 = vector.broadcast %14 : vector<1x128xf32> to vector<8x128xf32>
    %386 = arith.subf %385, %3 : vector<8x128xf32>
    %387 = vector.broadcast %380 : vector<1x128xf32> to vector<8x128xf32>
    %388 = arith.mulf %386, %387 : vector<8x128xf32>
    %389 = arith.mulf %384, %221 : vector<8x128xf32>
    %390 = arith.mulf %388, %238 : vector<8x128xf32>
    %391 = arith.addf %389, %390 : vector<8x128xf32>
    %392 = arith.subf %14, %12 : vector<1x128xf32>
    %cst_42 = arith.constant 1.000000e+00 : f32
    %393 = vector.broadcast %cst_42 : f32 to vector<1x128xf32>
    %394 = arith.divf %393, %392 : vector<1x128xf32>
    %395 = arith.subf %15, %13 : vector<1x128xf32>
    %cst_43 = arith.constant 1.000000e+00 : f32
    %396 = vector.broadcast %cst_43 : f32 to vector<1x128xf32>
    %397 = arith.divf %396, %395 : vector<1x128xf32>
    %398 = vector.broadcast %12 : vector<1x128xf32> to vector<8x128xf32>
    %399 = arith.subf %3, %398 : vector<8x128xf32>
    %400 = vector.broadcast %394 : vector<1x128xf32> to vector<8x128xf32>
    %401 = arith.mulf %399, %400 : vector<8x128xf32>
    %402 = vector.broadcast %15 : vector<1x128xf32> to vector<8x128xf32>
    %403 = arith.subf %402, %3 : vector<8x128xf32>
    %404 = vector.broadcast %397 : vector<1x128xf32> to vector<8x128xf32>
    %405 = arith.mulf %403, %404 : vector<8x128xf32>
    %406 = arith.mulf %401, %238 : vector<8x128xf32>
    %407 = arith.mulf %405, %255 : vector<8x128xf32>
    %408 = arith.addf %406, %407 : vector<8x128xf32>
    %409 = arith.subf %15, %13 : vector<1x128xf32>
    %cst_44 = arith.constant 1.000000e+00 : f32
    %410 = vector.broadcast %cst_44 : f32 to vector<1x128xf32>
    %411 = arith.divf %410, %409 : vector<1x128xf32>
    %412 = arith.subf %16, %14 : vector<1x128xf32>
    %cst_45 = arith.constant 1.000000e+00 : f32
    %413 = vector.broadcast %cst_45 : f32 to vector<1x128xf32>
    %414 = arith.divf %413, %412 : vector<1x128xf32>
    %415 = vector.broadcast %13 : vector<1x128xf32> to vector<8x128xf32>
    %416 = arith.subf %3, %415 : vector<8x128xf32>
    %417 = vector.broadcast %411 : vector<1x128xf32> to vector<8x128xf32>
    %418 = arith.mulf %416, %417 : vector<8x128xf32>
    %419 = vector.broadcast %16 : vector<1x128xf32> to vector<8x128xf32>
    %420 = arith.subf %419, %3 : vector<8x128xf32>
    %421 = vector.broadcast %414 : vector<1x128xf32> to vector<8x128xf32>
    %422 = arith.mulf %420, %421 : vector<8x128xf32>
    %423 = arith.mulf %418, %255 : vector<8x128xf32>
    %424 = arith.mulf %422, %272 : vector<8x128xf32>
    %425 = arith.addf %423, %424 : vector<8x128xf32>
    %426 = arith.subf %8, %5 : vector<1x128xf32>
    %cst_46 = arith.constant 1.000000e+00 : f32
    %427 = vector.broadcast %cst_46 : f32 to vector<1x128xf32>
    %428 = arith.divf %427, %426 : vector<1x128xf32>
    %429 = arith.subf %9, %6 : vector<1x128xf32>
    %cst_47 = arith.constant 1.000000e+00 : f32
    %430 = vector.broadcast %cst_47 : f32 to vector<1x128xf32>
    %431 = arith.divf %430, %429 : vector<1x128xf32>
    %432 = vector.broadcast %5 : vector<1x128xf32> to vector<8x128xf32>
    %433 = arith.subf %3, %432 : vector<8x128xf32>
    %434 = vector.broadcast %428 : vector<1x128xf32> to vector<8x128xf32>
    %435 = arith.mulf %433, %434 : vector<8x128xf32>
    %436 = vector.broadcast %9 : vector<1x128xf32> to vector<8x128xf32>
    %437 = arith.subf %436, %3 : vector<8x128xf32>
    %438 = vector.broadcast %431 : vector<1x128xf32> to vector<8x128xf32>
    %439 = arith.mulf %437, %438 : vector<8x128xf32>
    %440 = arith.mulf %435, %289 : vector<8x128xf32>
    %441 = arith.mulf %439, %306 : vector<8x128xf32>
    %442 = arith.addf %440, %441 : vector<8x128xf32>
    %443 = arith.subf %9, %6 : vector<1x128xf32>
    %cst_48 = arith.constant 1.000000e+00 : f32
    %444 = vector.broadcast %cst_48 : f32 to vector<1x128xf32>
    %445 = arith.divf %444, %443 : vector<1x128xf32>
    %446 = arith.subf %10, %7 : vector<1x128xf32>
    %cst_49 = arith.constant 1.000000e+00 : f32
    %447 = vector.broadcast %cst_49 : f32 to vector<1x128xf32>
    %448 = arith.divf %447, %446 : vector<1x128xf32>
    %449 = vector.broadcast %6 : vector<1x128xf32> to vector<8x128xf32>
    %450 = arith.subf %3, %449 : vector<8x128xf32>
    %451 = vector.broadcast %445 : vector<1x128xf32> to vector<8x128xf32>
    %452 = arith.mulf %450, %451 : vector<8x128xf32>
    %453 = vector.broadcast %10 : vector<1x128xf32> to vector<8x128xf32>
    %454 = arith.subf %453, %3 : vector<8x128xf32>
    %455 = vector.broadcast %448 : vector<1x128xf32> to vector<8x128xf32>
    %456 = arith.mulf %454, %455 : vector<8x128xf32>
    %457 = arith.mulf %452, %306 : vector<8x128xf32>
    %458 = arith.mulf %456, %323 : vector<8x128xf32>
    %459 = arith.addf %457, %458 : vector<8x128xf32>
    %460 = arith.subf %10, %7 : vector<1x128xf32>
    %cst_50 = arith.constant 1.000000e+00 : f32
    %461 = vector.broadcast %cst_50 : f32 to vector<1x128xf32>
    %462 = arith.divf %461, %460 : vector<1x128xf32>
    %463 = arith.subf %11, %8 : vector<1x128xf32>
    %cst_51 = arith.constant 1.000000e+00 : f32
    %464 = vector.broadcast %cst_51 : f32 to vector<1x128xf32>
    %465 = arith.divf %464, %463 : vector<1x128xf32>
    %466 = vector.broadcast %7 : vector<1x128xf32> to vector<8x128xf32>
    %467 = arith.subf %3, %466 : vector<8x128xf32>
    %468 = vector.broadcast %462 : vector<1x128xf32> to vector<8x128xf32>
    %469 = arith.mulf %467, %468 : vector<8x128xf32>
    %470 = vector.broadcast %11 : vector<1x128xf32> to vector<8x128xf32>
    %471 = arith.subf %470, %3 : vector<8x128xf32>
    %472 = vector.broadcast %465 : vector<1x128xf32> to vector<8x128xf32>
    %473 = arith.mulf %471, %472 : vector<8x128xf32>
    %474 = arith.mulf %469, %323 : vector<8x128xf32>
    %475 = arith.mulf %473, %340 : vector<8x128xf32>
    %476 = arith.addf %474, %475 : vector<8x128xf32>
    %477 = arith.subf %11, %8 : vector<1x128xf32>
    %cst_52 = arith.constant 1.000000e+00 : f32
    %478 = vector.broadcast %cst_52 : f32 to vector<1x128xf32>
    %479 = arith.divf %478, %477 : vector<1x128xf32>
    %480 = arith.subf %12, %9 : vector<1x128xf32>
    %cst_53 = arith.constant 1.000000e+00 : f32
    %481 = vector.broadcast %cst_53 : f32 to vector<1x128xf32>
    %482 = arith.divf %481, %480 : vector<1x128xf32>
    %483 = vector.broadcast %8 : vector<1x128xf32> to vector<8x128xf32>
    %484 = arith.subf %3, %483 : vector<8x128xf32>
    %485 = vector.broadcast %479 : vector<1x128xf32> to vector<8x128xf32>
    %486 = arith.mulf %484, %485 : vector<8x128xf32>
    %487 = vector.broadcast %12 : vector<1x128xf32> to vector<8x128xf32>
    %488 = arith.subf %487, %3 : vector<8x128xf32>
    %489 = vector.broadcast %482 : vector<1x128xf32> to vector<8x128xf32>
    %490 = arith.mulf %488, %489 : vector<8x128xf32>
    %491 = arith.mulf %486, %340 : vector<8x128xf32>
    %492 = arith.mulf %490, %357 : vector<8x128xf32>
    %493 = arith.addf %491, %492 : vector<8x128xf32>
    %494 = arith.subf %12, %9 : vector<1x128xf32>
    %cst_54 = arith.constant 1.000000e+00 : f32
    %495 = vector.broadcast %cst_54 : f32 to vector<1x128xf32>
    %496 = arith.divf %495, %494 : vector<1x128xf32>
    %497 = arith.subf %13, %10 : vector<1x128xf32>
    %cst_55 = arith.constant 1.000000e+00 : f32
    %498 = vector.broadcast %cst_55 : f32 to vector<1x128xf32>
    %499 = arith.divf %498, %497 : vector<1x128xf32>
    %500 = vector.broadcast %9 : vector<1x128xf32> to vector<8x128xf32>
    %501 = arith.subf %3, %500 : vector<8x128xf32>
    %502 = vector.broadcast %496 : vector<1x128xf32> to vector<8x128xf32>
    %503 = arith.mulf %501, %502 : vector<8x128xf32>
    %504 = vector.broadcast %13 : vector<1x128xf32> to vector<8x128xf32>
    %505 = arith.subf %504, %3 : vector<8x128xf32>
    %506 = vector.broadcast %499 : vector<1x128xf32> to vector<8x128xf32>
    %507 = arith.mulf %505, %506 : vector<8x128xf32>
    %508 = arith.mulf %503, %357 : vector<8x128xf32>
    %509 = arith.mulf %507, %374 : vector<8x128xf32>
    %510 = arith.addf %508, %509 : vector<8x128xf32>
    %511 = arith.subf %13, %10 : vector<1x128xf32>
    %cst_56 = arith.constant 1.000000e+00 : f32
    %512 = vector.broadcast %cst_56 : f32 to vector<1x128xf32>
    %513 = arith.divf %512, %511 : vector<1x128xf32>
    %514 = arith.subf %14, %11 : vector<1x128xf32>
    %cst_57 = arith.constant 1.000000e+00 : f32
    %515 = vector.broadcast %cst_57 : f32 to vector<1x128xf32>
    %516 = arith.divf %515, %514 : vector<1x128xf32>
    %517 = vector.broadcast %10 : vector<1x128xf32> to vector<8x128xf32>
    %518 = arith.subf %3, %517 : vector<8x128xf32>
    %519 = vector.broadcast %513 : vector<1x128xf32> to vector<8x128xf32>
    %520 = arith.mulf %518, %519 : vector<8x128xf32>
    %521 = vector.broadcast %14 : vector<1x128xf32> to vector<8x128xf32>
    %522 = arith.subf %521, %3 : vector<8x128xf32>
    %523 = vector.broadcast %516 : vector<1x128xf32> to vector<8x128xf32>
    %524 = arith.mulf %522, %523 : vector<8x128xf32>
    %525 = arith.mulf %520, %374 : vector<8x128xf32>
    %526 = arith.mulf %524, %391 : vector<8x128xf32>
    %527 = arith.addf %525, %526 : vector<8x128xf32>
    %528 = arith.subf %14, %11 : vector<1x128xf32>
    %cst_58 = arith.constant 1.000000e+00 : f32
    %529 = vector.broadcast %cst_58 : f32 to vector<1x128xf32>
    %530 = arith.divf %529, %528 : vector<1x128xf32>
    %531 = arith.subf %15, %12 : vector<1x128xf32>
    %cst_59 = arith.constant 1.000000e+00 : f32
    %532 = vector.broadcast %cst_59 : f32 to vector<1x128xf32>
    %533 = arith.divf %532, %531 : vector<1x128xf32>
    %534 = vector.broadcast %11 : vector<1x128xf32> to vector<8x128xf32>
    %535 = arith.subf %3, %534 : vector<8x128xf32>
    %536 = vector.broadcast %530 : vector<1x128xf32> to vector<8x128xf32>
    %537 = arith.mulf %535, %536 : vector<8x128xf32>
    %538 = vector.broadcast %15 : vector<1x128xf32> to vector<8x128xf32>
    %539 = arith.subf %538, %3 : vector<8x128xf32>
    %540 = vector.broadcast %533 : vector<1x128xf32> to vector<8x128xf32>
    %541 = arith.mulf %539, %540 : vector<8x128xf32>
    %542 = arith.mulf %537, %391 : vector<8x128xf32>
    %543 = arith.mulf %541, %408 : vector<8x128xf32>
    %544 = arith.addf %542, %543 : vector<8x128xf32>
    %545 = arith.subf %15, %12 : vector<1x128xf32>
    %cst_60 = arith.constant 1.000000e+00 : f32
    %546 = vector.broadcast %cst_60 : f32 to vector<1x128xf32>
    %547 = arith.divf %546, %545 : vector<1x128xf32>
    %548 = arith.subf %16, %13 : vector<1x128xf32>
    %cst_61 = arith.constant 1.000000e+00 : f32
    %549 = vector.broadcast %cst_61 : f32 to vector<1x128xf32>
    %550 = arith.divf %549, %548 : vector<1x128xf32>
    %551 = vector.broadcast %12 : vector<1x128xf32> to vector<8x128xf32>
    %552 = arith.subf %3, %551 : vector<8x128xf32>
    %553 = vector.broadcast %547 : vector<1x128xf32> to vector<8x128xf32>
    %554 = arith.mulf %552, %553 : vector<8x128xf32>
    %555 = vector.broadcast %16 : vector<1x128xf32> to vector<8x128xf32>
    %556 = arith.subf %555, %3 : vector<8x128xf32>
    %557 = vector.broadcast %550 : vector<1x128xf32> to vector<8x128xf32>
    %558 = arith.mulf %556, %557 : vector<8x128xf32>
    %559 = arith.mulf %554, %408 : vector<8x128xf32>
    %560 = arith.mulf %558, %425 : vector<8x128xf32>
    %561 = arith.addf %559, %560 : vector<8x128xf32>
    %c0_62 = arith.constant 0 : index
    %c0_63 = arith.constant 0 : index
    %c0_64 = arith.constant 0 : index
    %562 = vector.load %arg6[%c0_62, %c0_63, %c0_64] : memref<1x1024x128xf32, #tpu.memory_space<vmem>>, vector<1x1024x128xf32>
    %563 = vector.shape_cast %562 : vector<1x1024x128xf32> to vector<1024x128xf32>
    %564 = tpu.concatenate %442, %459, %476, %493, %510, %527, %544, %561 in 1 : vector<8x128xf32>, vector<8x128xf32>, vector<8x128xf32>, vector<8x128xf32>, vector<8x128xf32>, vector<8x128xf32>, vector<8x128xf32>, vector<8x128xf32> -> vector<8x1024xf32>
    %cst_65 = arith.constant dense<0.000000e+00> : vector<8x128xf32>
    %565 = tpu.matmul %564, %563, %cst_65 {dimension_numbers = #tpu.dot_dimension_numbers<[1], [0], [0], [1], [0, 0, 1, 1], [], []>} : vector<8x1024xf32>, vector<1024x128xf32>, vector<8x128xf32> -> vector<8x128xf32>
    %566 = arith.addf %25, %565 : vector<8x128xf32>
    %c0_66 = arith.constant 0 : index
    %c0_67 = arith.constant 0 : index
    %567 = vector.load %arg8[%c0_66, %c0_67] : memref<8x128xf32, #tpu.memory_space<vmem>>, vector<8x128xf32>
    %568 = arith.addf %567, %566 : vector<8x128xf32>
    %c0_68 = arith.constant 0 : index
    %c0_69 = arith.constant 0 : index
    %569 = vector.load %arg8[%c0_68, %c0_69] : memref<8x128xf32, #tpu.memory_space<vmem>>, vector<8x128xf32>
    tpu.vector_store %arg8[%c0_68, %c0_69], %568 {strides = array<i32>} : memref<8x128xf32, #tpu.memory_space<vmem>>, vector<8x128xf32>,
    %c0_i32_70 = arith.constant 0 : i32
    %570 = arith.cmpi eq, %arg2, %c0_i32_70 : i32
    %571 = arith.extui %570 : i1 to i32
    %c0_i32_71 = arith.constant 0 : i32
    %572 = arith.cmpi ne, %571, %c0_i32_71 : i32
    scf.if %572 {
      %c0_72 = arith.constant 0 : index
      %c0_73 = arith.constant 0 : index
      %573 = vector.load %arg8[%c0_72, %c0_73] : memref<8x128xf32, #tpu.memory_space<vmem>>, vector<8x128xf32>
      %c0_74 = arith.constant 0 : index
      %c0_75 = arith.constant 0 : index
      %574 = vector.load %arg7[%c0_74, %c0_75] : memref<8x128xf32, #tpu.memory_space<vmem>>, vector<8x128xf32>
      tpu.vector_store %arg7[%c0_74, %c0_75], %573 {strides = array<i32>} : memref<8x128xf32, #tpu.memory_space<vmem>>, vector<8x128xf32>,
    } else {
    }
    return
  }
  func.func @transform_0(%arg0: i32, %arg1: i32, %arg2: i32) -> (i32, i32) {
    %c0_i32 = arith.constant 0 : i32
    return %arg0, %arg2 : i32, i32
  }
  func.func @transform_1(%arg0: i32, %arg1: i32, %arg2: i32) -> (i32, i32) {
    %c0_i32 = arith.constant 0 : i32
    %c0_i32_0 = arith.constant 0 : i32
    return %c0_i32, %arg2 : i32, i32
  }
  func.func @transform_2(%arg0: i32, %arg1: i32, %arg2: i32) -> (i32, i32) {
    %c0_i32 = arith.constant 0 : i32
    return %arg2, %arg1 : i32, i32
  }
  func.func @transform_3(%arg0: i32, %arg1: i32, %arg2: i32) -> (i32, i32, i32) {
    %c0_i32 = arith.constant 0 : i32
    %c0_i32_0 = arith.constant 0 : i32
    return %arg2, %c0_i32, %arg1 : i32, i32, i32
  }
  func.func @transform_4(%arg0: i32, %arg1: i32, %arg2: i32) -> (i32, i32) {
    %c0_i32 = arith.constant 0 : i32
    return %arg0, %arg1 : i32, i32
  }
}

</mosaic_0001>

<llo_original>
// kernel: tpu_custom_call.1
$region0: #{tpu_custom_call.1}
  #allocation0 [shape = 'u32[]', space=smem, size = 0x4, offset = 0x4, fixed_abs, tag = 'smem constant byte address 0x4 - core index']
  #allocation1 [shape = 'u32[144,128]{1,0:T(1,128)}', space=vmem, size = 0x12000, scoped, tag = 'internal scratch']
  #allocation2 [shape = 'f32[8,128]{1,0:T(8,128)}', space=vmem, size = 0x1000, scoped, tag = 'scratch operand']
  %s0 = inlined_call_operand.hbm [shape: f32[8,128], index: 0, kind: input, shape index: {}]
  %s1 = inlined_call_operand.hbm [shape: f32[12,128], index: 1, kind: input, shape index: {}]
  %s2 = inlined_call_operand.hbm [shape: f32[128,128], index: 2, kind: input, shape index: {}]
  %s3 = inlined_call_operand.hbm [shape: f32[1,1024,128], index: 3, kind: input, shape index: {}]
  %s4 = inlined_call_operand.hbm [shape: f32[8,128], index: 4, kind: output, shape index: {}]
  %s5 = sld [smem:[#allocation0]]
  $region50: #{tpu_custom_call.1} parent=0
    _
  %s7 = ssub.s32 1, %s5
  %s8 = scalar_select 0, %s7, %s5
  $region1: #{tpu_custom_call.1} parent=0
    #allocation3 [shape = 'u8[4096]{0}', space=vmem, size = 0x1000, scoped, tag = 'input window, operand 0, single buffered']
    #allocation4 [shape = 's32[1]{0}', space=sflag, size = 0x4, scoped, tag = 'scoped memory for tpu_custom_call.1']
    #allocation5 [shape = 's32[1]{0}', space=sflag, size = 0x4, scoped, tag = 'scoped memory for tpu_custom_call.1']
    #allocation6 [shape = 'u8[8192]{0}', space=vmem, size = 0x2000, scoped, tag = 'input window, operand 1, single buffered']
    #allocation7 [shape = 's32[1]{0}', space=sflag, size = 0x4, scoped, tag = 'scoped memory for tpu_custom_call.1']
    #allocation8 [shape = 'u8[65536]{0}', space=vmem, size = 0x10000, scoped, tag = 'input window, operand 2, single buffered']
    #allocation9 [shape = 'u8[524288]{0}', space=vmem, size = 0x80000, scoped, tag = 'input window, operand 3, single buffered']
    #allocation10 [shape = 's32[1]{0}', space=sflag, size = 0x4, scoped, tag = 'scoped memory for tpu_custom_call.1']
    #allocation11 [shape = 'u8[4096]{0}', space=vmem, size = 0x1000, scoped, tag = 'output window, operand 0, single buffered']
    %9 = vsyncpa [#allocation4], 0
    %10 = vsyncpa [#allocation7], 0
    %11 = vsyncpa [#allocation10], 0
    %12 = vsyncpa [#allocation5], 0
    // Predicated region
    $region2: #{tpu_custom_call.1} parent=1 // pred_check
      _
    $region3: #{tpu_custom_call.1} parent=1 // pred_check_branch
      %14 = sbr.rel (0) target = $region5
    $region4: #{tpu_custom_call.1} parent=1 // pred_region
      %s16 = ssub.s32 128, 128
      %17 = vsyncadd [#allocation4], %s16
      %s19 = sshll.u32 [#allocation3], 4
      %s20 = int_to_ptr.vmem [resolvable:$true] %s19
      %22 = dma.hbm_to_vmem [thread:$0]  %s0, 128, %s20, [#allocation4]
    $region5: #{tpu_custom_call.1} parent=1 // pred_fallthru
      _
    // Predicated region
    $region6: #{tpu_custom_call.1} parent=1 // pred_check
      _
    $region7: #{tpu_custom_call.1} parent=1 // pred_check_branch
      %24 = sbr.rel (0) target = $region9
    $region8: #{tpu_custom_call.1} parent=1 // pred_region
      %s26 = ssub.s32 256, 256
      %27 = vsyncadd [#allocation7], %s26
      %s28 = sshll.u32 [#allocation6], 4
      %s29 = int_to_ptr.vmem [resolvable:$true] %s28
      %34 = dma.hbm_to_vmem [thread:$0]  %s1, 256, %s29, [#allocation7], 128, 128, 8
    $region9: #{tpu_custom_call.1} parent=1 // pred_fallthru
      _
    // Predicated region
    $region10: #{tpu_custom_call.1} parent=1 // pred_check
      _
    $region11: #{tpu_custom_call.1} parent=1 // pred_check_branch
      %36 = sbr.rel (0) target = $region13
    $region12: #{tpu_custom_call.1} parent=1 // pred_region
      %s38 = ssub.s32 2048, 2048
      %39 = vsyncadd [#allocation7], %s38
      %s40 = sshll.u32 [#allocation8], 4
      %s41 = int_to_ptr.vmem [resolvable:$true] %s40
      %46 = dma.hbm_to_vmem [thread:$0]  %s2, 2048, %s41, [#allocation7], 128, 128, 8
    $region13: #{tpu_custom_call.1} parent=1 // pred_fallthru
      _
    // Predicated region
    $region14: #{tpu_custom_call.1} parent=1 // pred_check
      _
    $region15: #{tpu_custom_call.1} parent=1 // pred_check_branch
      %48 = sbr.rel (0) target = $region17
    $region16: #{tpu_custom_call.1} parent=1 // pred_region
      %s50 = ssub.s32 16384, 16384
      %51 = vsyncadd [#allocation10], %s50
      %s52 = sshll.u32 [#allocation9], 4
      %s53 = int_to_ptr.vmem [resolvable:$true] %s52
      %58 = dma.hbm_to_vmem [thread:$0]  %s3, 16384, %s53, [#allocation10], 128, 128, 8
    $region17: #{tpu_custom_call.1} parent=1 // pred_fallthru
      _
    // Predicated region
    $region18: #{tpu_custom_call.1} parent=1 // pred_check
      _
    $region19: #{tpu_custom_call.1} parent=1 // pred_check_branch
      %60 = sbr.rel (0) target = $region21
    $region20: #{tpu_custom_call.1} parent=1 // pred_region
      %61 = dma.done [#allocation4], 128
    $region21: #{tpu_custom_call.1} parent=1 // pred_fallthru
      _
    // Predicated region
    $region22: #{tpu_custom_call.1} parent=1 // pred_check
      _
    $region23: #{tpu_custom_call.1} parent=1 // pred_check_branch
      %63 = sbr.rel (0) target = $region25
    $region24: #{tpu_custom_call.1} parent=1 // pred_region
      %64 = dma.done [#allocation7], 256
    $region25: #{tpu_custom_call.1} parent=1 // pred_fallthru
      _
    // Predicated region
    $region26: #{tpu_custom_call.1} parent=1 // pred_check
      _
    $region27: #{tpu_custom_call.1} parent=1 // pred_check_branch
      %66 = sbr.rel (0) target = $region29
    $region28: #{tpu_custom_call.1} parent=1 // pred_region
      %67 = dma.done [#allocation7], 2048
    $region29: #{tpu_custom_call.1} parent=1 // pred_fallthru
      _
    // Predicated region
    $region30: #{tpu_custom_call.1} parent=1 // pred_check
      _
    $region31: #{tpu_custom_call.1} parent=1 // pred_check_branch
      %69 = sbr.rel (0) target = $region33
    $region32: #{tpu_custom_call.1} parent=1 // pred_region
      %70 = dma.done [#allocation10], 16384
    $region33: #{tpu_custom_call.1} parent=1 // pred_fallthru
      _
    %p71 = scmp.eq.s32.totalorder 0, 0
    // Predicated region
    $region34: #{tpu_custom_call.1} parent=1 // pred_check
      %p72 = pneg %p71
    $region35: #{tpu_custom_call.1} parent=1 // pred_check_branch
      %74 = sbr.rel (%p72) target = $region37
    $region36: #{tpu_custom_call.1} parent=1 // pred_region
      %75 = vst [vmem:[#allocation2] sm:$0xff] 0.0
    $region37: #{tpu_custom_call.1} parent=1 // pred_fallthru
      _
    %v76 = vld [vmem:[#allocation3] sm:$0xff]
    %v77 = vld [vmem:[#allocation6] sm:$0xff]
    %v78 = vld [vmem:[#allocation6 + $0x8] sm:$0xf]
    %v79 = vld [vmem:[#allocation8] sm:$0xff]
    %v80 = vld [vmem:[#allocation8 + $0x8] sm:$0xff]
    %v81 = vld [vmem:[#allocation8 + $0x10] sm:$0xff]
    %v82 = vld [vmem:[#allocation8 + $0x18] sm:$0xff]
    %v83 = vld [vmem:[#allocation8 + $0x20] sm:$0xff]
    %v84 = vld [vmem:[#allocation8 + $0x28] sm:$0xff]
    %v85 = vld [vmem:[#allocation8 + $0x30] sm:$0xff]
    %v86 = vld [vmem:[#allocation8 + $0x38] sm:$0xff]
    %v87 = vld [vmem:[#allocation8 + $0x40] sm:$0xff]
    %v88 = vld [vmem:[#allocation8 + $0x48] sm:$0xff]
    %v89 = vld [vmem:[#allocation8 + $0x50] sm:$0xff]
    %v90 = vld [vmem:[#allocation8 + $0x58] sm:$0xff]
    %v91 = vld [vmem:[#allocation8 + $0x60] sm:$0xff]
    %v92 = vld [vmem:[#allocation8 + $0x68] sm:$0xff]
    %v93 = vld [vmem:[#allocation8 + $0x70] sm:$0xff]
    %v94 = vld [vmem:[#allocation8 + $0x78] sm:$0xff]
    %v95 = vsub.f32 0.0, %v76
    %v96 = vmul.f32 %v95, 1.442695
    %v97 = vpow.pop %v96
    %v98 = vadd.f32 %v97, 1.0
    %v99 = vrcp.pop %v98
    %v100 = vmul.f32 %v76, %v99
    %v101 = vlaneseq
    %v102 = vshrl.u32 %v101, 7
    %v103 = vsub.s32 0, %v102
    %v104 = vrot.slane %v77, %v103
    %vm105 = vcmp.ge.f32.partialorder %v76, %v104
    %v106 = vlaneseq
    %v107 = vshrl.u32 %v106, 7
    %v108 = vsub.s32 1, %v107
    %v109 = vrot.slane %v77, %v108
    %vm110 = vcmp.lt.f32.partialorder %v76, %v109
    %vm111 = vmand %vm105, %vm110
    %v112 = vsel %vm111, 1, 0
    %v113 = vcvt.s32.f32 %v112
    %vm114 = vcmp.ge.f32.partialorder %v76, %v109
    %v115 = vlaneseq
    %v116 = vshrl.u32 %v115, 7
    %v117 = vsub.s32 2, %v116
    %v118 = vrot.slane %v77, %v117
    %vm119 = vcmp.lt.f32.partialorder %v76, %v118
    %vm120 = vmand %vm114, %vm119
    %v121 = vsel %vm120, 1, 0
    %v122 = vcvt.s32.f32 %v121
    %vm123 = vcmp.ge.f32.partialorder %v76, %v118
    %v124 = vlaneseq
    %v125 = vshrl.u32 %v124, 7
    %v126 = vsub.s32 3, %v125
    %v127 = vrot.slane %v77, %v126
    %vm128 = vcmp.lt.f32.partialorder %v76, %v127
    %vm129 = vmand %vm123, %vm128
    %v130 = vsel %vm129, 1, 0
    %v131 = vcvt.s32.f32 %v130
    %vm132 = vcmp.ge.f32.partialorder %v76, %v127
    %v133 = vlaneseq
    %v134 = vshrl.u32 %v133, 7
    %v135 = vsub.s32 4, %v134
    %v136 = vrot.slane %v77, %v135
    %vm137 = vcmp.lt.f32.partialorder %v76, %v136
    %vm138 = vmand %vm132, %vm137
    %v139 = vsel %vm138, 1, 0
    %v140 = vcvt.s32.f32 %v139
    %vm141 = vcmp.ge.f32.partialorder %v76, %v136
    %v142 = vlaneseq
    %v143 = vshrl.u32 %v142, 7
    %v144 = vsub.s32 5, %v143
    %v145 = vrot.slane %v77, %v144
    %vm146 = vcmp.lt.f32.partialorder %v76, %v145
    %vm147 = vmand %vm141, %vm146
    %v148 = vsel %vm147, 1, 0
    %v149 = vcvt.s32.f32 %v148
    %vm150 = vcmp.ge.f32.partialorder %v76, %v145
    %v151 = vlaneseq
    %v152 = vshrl.u32 %v151, 7
    %v153 = vsub.s32 6, %v152
    %v154 = vrot.slane %v77, %v153
    %vm155 = vcmp.lt.f32.partialorder %v76, %v154
    %vm156 = vmand %vm150, %vm155
    %v157 = vsel %vm156, 1, 0
    %v158 = vcvt.s32.f32 %v157
    %vm159 = vcmp.ge.f32.partialorder %v76, %v154
    %v160 = vlaneseq
    %v161 = vshrl.u32 %v160, 7
    %v162 = vsub.s32 7, %v161
    %v163 = vrot.slane %v77, %v162
    %vm164 = vcmp.lt.f32.partialorder %v76, %v163
    %vm165 = vmand %vm159, %vm164
    %v166 = vsel %vm165, 1, 0
    %v167 = vcvt.s32.f32 %v166
    %vm168 = vcmp.ge.f32.partialorder %v76, %v163
    %v169 = vlaneseq
    %v170 = vshrl.u32 %v169, 7
    %v171 = vsub.s32 0, %v170
    %v172 = vrot.slane %v78, %v171
    %vm173 = vcmp.lt.f32.partialorder %v76, %v172
    %vm174 = vmand %vm168, %vm173
    %v175 = vsel %vm174, 1, 0
    %v176 = vcvt.s32.f32 %v175
    %vm177 = vcmp.ge.f32.partialorder %v76, %v172
    %v178 = vlaneseq
    %v179 = vshrl.u32 %v178, 7
    %v180 = vsub.s32 1, %v179
    %v181 = vrot.slane %v78, %v180
    %vm182 = vcmp.lt.f32.partialorder %v76, %v181
    %vm183 = vmand %vm177, %vm182
    %v184 = vsel %vm183, 1, 0
    %v185 = vcvt.s32.f32 %v184
    %vm186 = vcmp.ge.f32.partialorder %v76, %v181
    %v187 = vlaneseq
    %v188 = vshrl.u32 %v187, 7
    %v189 = vsub.s32 2, %v188
    %v190 = vrot.slane %v78, %v189
    %vm191 = vcmp.lt.f32.partialorder %v76, %v190
    %vm192 = vmand %vm186, %vm191
    %v193 = vsel %vm192, 1, 0
    %v194 = vcvt.s32.f32 %v193
    %vm195 = vcmp.ge.f32.partialorder %v76, %v190
    %v196 = vlaneseq
    %v197 = vshrl.u32 %v196, 7
    %v198 = vsub.s32 3, %v197
    %v199 = vrot.slane %v78, %v198
    %vm200 = vcmp.lt.f32.partialorder %v76, %v199
    %vm201 = vmand %vm195, %vm200
    %v202 = vsel %vm201, 1, 0
    %v203 = vcvt.s32.f32 %v202
    %v205 = vrot.slane %v77, 7
    %v207 = vsub.f32 %v77, %v205
    %v208 = vrcp.pop %v207
    %v209 = vmul.f32 1.0, %v208
    %v210 = vsub.f32 %v76, %v104
    %v211 = vlaneseq
    %v212 = vshrl.u32 %v211, 7
    %v213 = vsub.s32 1, %v212
    %v214 = vrot.slane %v209, %v213
    %v215 = vmul.f32 %v210, %v214
    %v216 = vsub.f32 %v118, %v76
    %v217 = vlaneseq
    %v218 = vshrl.u32 %v217, 7
    %v219 = vsub.s32 2, %v218
    %v220 = vrot.slane %v209, %v219
    %v221 = vmul.f32 %v216, %v220
    %v222 = vmul.f32 %v215, %v113
    %v223 = vmul.f32 %v221, %v122
    %v224 = vadd.f32 %v222, %v223
    %v225 = vsub.f32 %v76, %v109
    %v226 = vmul.f32 %v225, %v220
    %v227 = vsub.f32 %v127, %v76
    %v228 = vlaneseq
    %v229 = vshrl.u32 %v228, 7
    %v230 = vsub.s32 3, %v229
    %v231 = vrot.slane %v209, %v230
    %v232 = vmul.f32 %v227, %v231
    %v233 = vmul.f32 %v226, %v122
    %v234 = vmul.f32 %v232, %v131
    %v235 = vadd.f32 %v233, %v234
    %v236 = vsub.f32 %v76, %v118
    %v237 = vmul.f32 %v236, %v231
    %v238 = vsub.f32 %v136, %v76
    %v239 = vlaneseq
    %v240 = vshrl.u32 %v239, 7
    %v241 = vsub.s32 4, %v240
    %v242 = vrot.slane %v209, %v241
    %v243 = vmul.f32 %v238, %v242
    %v244 = vmul.f32 %v237, %v131
    %v245 = vmul.f32 %v243, %v140
    %v246 = vadd.f32 %v244, %v245
    %v247 = vsub.f32 %v76, %v127
    %v248 = vmul.f32 %v247, %v242
    %v249 = vsub.f32 %v145, %v76
    %v250 = vlaneseq
    %v251 = vshrl.u32 %v250, 7
    %v252 = vsub.s32 5, %v251
    %v253 = vrot.slane %v209, %v252
    %v254 = vmul.f32 %v249, %v253
    %v255 = vmul.f32 %v248, %v140
    %v256 = vmul.f32 %v254, %v149
    %v257 = vadd.f32 %v255, %v256
    %v258 = vsub.f32 %v76, %v136
    %v259 = vmul.f32 %v258, %v253
    %v260 = vsub.f32 %v154, %v76
    %v261 = vlaneseq
    %v262 = vshrl.u32 %v261, 7
    %v263 = vsub.s32 6, %v262
    %v264 = vrot.slane %v209, %v263
    %v265 = vmul.f32 %v260, %v264
    %v266 = vmul.f32 %v259, %v149
    %v267 = vmul.f32 %v265, %v158
    %v268 = vadd.f32 %v266, %v267
    %v269 = vsub.f32 %v76, %v145
    %v270 = vmul.f32 %v269, %v264
    %v271 = vsub.f32 %v163, %v76
    %v272 = vlaneseq
    %v273 = vshrl.u32 %v272, 7
    %v274 = vsub.s32 7, %v273
    %v275 = vrot.slane %v209, %v274
    %v276 = vmul.f32 %v271, %v275
    %v277 = vmul.f32 %v270, %v158
    %v278 = vmul.f32 %v276, %v167
    %v279 = vadd.f32 %v277, %v278
    %v280 = vsub.f32 %v78, %v205
    %v281 = vrcp.pop %v280
    %v282 = vmul.f32 1.0, %v281
    %v283 = vsub.f32 %v76, %v154
    %v284 = vmul.f32 %v283, %v275
    %v285 = vsub.f32 %v172, %v76
    %v286 = vlaneseq
    %v287 = vshrl.u32 %v286, 7
    %v288 = vsub.s32 0, %v287
    %v289 = vrot.slane %v282, %v288
    %v290 = vmul.f32 %v285, %v289
    %v291 = vmul.f32 %v284, %v167
    %v292 = vmul.f32 %v290, %v176
    %v293 = vadd.f32 %v291, %v292
    %v295 = vrot.slane %v78, 7
    %v297 = vsub.f32 %v78, %v295
    %v298 = vrcp.pop %v297
    %v299 = vmul.f32 1.0, %v298
    %v300 = vsub.f32 %v76, %v163
    %v301 = vmul.f32 %v300, %v289
    %v302 = vsub.f32 %v181, %v76
    %v303 = vlaneseq
    %v304 = vshrl.u32 %v303, 7
    %v305 = vsub.s32 1, %v304
    %v306 = vrot.slane %v299, %v305
    %v307 = vmul.f32 %v302, %v306
    %v308 = vmul.f32 %v301, %v176
    %v309 = vmul.f32 %v307, %v185
    %v310 = vadd.f32 %v308, %v309
    %v311 = vsub.f32 %v76, %v172
    %v312 = vmul.f32 %v311, %v306
    %v313 = vsub.f32 %v190, %v76
    %v314 = vlaneseq
    %v315 = vshrl.u32 %v314, 7
    %v316 = vsub.s32 2, %v315
    %v317 = vrot.slane %v299, %v316
    %v318 = vmul.f32 %v313, %v317
    %v319 = vmul.f32 %v312, %v185
    %v320 = vmul.f32 %v318, %v194
    %v321 = vadd.f32 %v319, %v320
    %v322 = vsub.f32 %v76, %v181
    %v323 = vmul.f32 %v322, %v317
    %v324 = vsub.f32 %v199, %v76
    %v325 = vlaneseq
    %v326 = vshrl.u32 %v325, 7
    %v327 = vsub.s32 3, %v326
    %v328 = vrot.slane %v299, %v327
    %v329 = vmul.f32 %v324, %v328
    %v330 = vmul.f32 %v323, %v194
    %v331 = vmul.f32 %v329, %v203
    %v332 = vadd.f32 %v330, %v331
    %v333 = vrot.slane %v77, 6
    %v335 = vsub.f32 %v77, %v333
    %v336 = vrcp.pop %v335
    %v337 = vmul.f32 1.0, %v336
    %v338 = vlaneseq
    %v339 = vshrl.u32 %v338, 7
    %v340 = vsub.s32 2, %v339
    %v341 = vrot.slane %v337, %v340
    %v342 = vmul.f32 %v210, %v341
    %v343 = vlaneseq
    %v344 = vshrl.u32 %v343, 7
    %v345 = vsub.s32 3, %v344
    %v346 = vrot.slane %v337, %v345
    %v347 = vmul.f32 %v227, %v346
    %v348 = vmul.f32 %v342, %v224
    %v349 = vmul.f32 %v347, %v235
    %v350 = vadd.f32 %v348, %v349
    %v351 = vmul.f32 %v225, %v346
    %v352 = vlaneseq
    %v353 = vshrl.u32 %v352, 7
    %v354 = vsub.s32 4, %v353
    %v355 = vrot.slane %v337, %v354
    %v356 = vmul.f32 %v238, %v355
    %v357 = vmul.f32 %v351, %v235
    %v358 = vmul.f32 %v356, %v246
    %v359 = vadd.f32 %v357, %v358
    %v360 = vmul.f32 %v236, %v355
    %v361 = vlaneseq
    %v362 = vshrl.u32 %v361, 7
    %v363 = vsub.s32 5, %v362
    %v364 = vrot.slane %v337, %v363
    %v365 = vmul.f32 %v249, %v364
    %v366 = vmul.f32 %v360, %v246
    %v367 = vmul.f32 %v365, %v257
    %v368 = vadd.f32 %v366, %v367
    %v369 = vmul.f32 %v247, %v364
    %v370 = vlaneseq
    %v371 = vshrl.u32 %v370, 7
    %v372 = vsub.s32 6, %v371
    %v373 = vrot.slane %v337, %v372
    %v374 = vmul.f32 %v260, %v373
    %v375 = vmul.f32 %v369, %v257
    %v376 = vmul.f32 %v374, %v268
    %v377 = vadd.f32 %v375, %v376
    %v378 = vmul.f32 %v258, %v373
    %v379 = vlaneseq
    %v380 = vshrl.u32 %v379, 7
    %v381 = vsub.s32 7, %v380
    %v382 = vrot.slane %v337, %v381
    %v383 = vmul.f32 %v271, %v382
    %v384 = vmul.f32 %v378, %v268
    %v385 = vmul.f32 %v383, %v279
    %v386 = vadd.f32 %v384, %v385
    %v387 = vsub.f32 %v78, %v333
    %v388 = vrcp.pop %v387
    %v389 = vmul.f32 1.0, %v388
    %v390 = vmul.f32 %v269, %v382
    %v391 = vlaneseq
    %v392 = vshrl.u32 %v391, 7
    %v393 = vsub.s32 0, %v392
    %v394 = vrot.slane %v389, %v393
    %v395 = vmul.f32 %v285, %v394
    %v396 = vmul.f32 %v390, %v279
    %v397 = vmul.f32 %v395, %v293
    %v398 = vadd.f32 %v396, %v397
    %v399 = vmul.f32 %v283, %v394
    %v400 = vlaneseq
    %v401 = vshrl.u32 %v400, 7
    %v402 = vsub.s32 1, %v401
    %v403 = vrot.slane %v389, %v402
    %v404 = vmul.f32 %v302, %v403
    %v405 = vmul.f32 %v399, %v293
    %v406 = vmul.f32 %v404, %v310
    %v407 = vadd.f32 %v405, %v406
    %v408 = vrot.slane %v78, 6
    %v410 = vsub.f32 %v78, %v408
    %v411 = vrcp.pop %v410
    %v412 = vmul.f32 1.0, %v411
    %v413 = vmul.f32 %v300, %v403
    %v414 = vlaneseq
    %v415 = vshrl.u32 %v414, 7
    %v416 = vsub.s32 2, %v415
    %v417 = vrot.slane %v412, %v416
    %v418 = vmul.f32 %v313, %v417
    %v419 = vmul.f32 %v413, %v310
    %v420 = vmul.f32 %v418, %v321
    %v421 = vadd.f32 %v419, %v420
    %v422 = vmul.f32 %v311, %v417
    %v423 = vlaneseq
    %v424 = vshrl.u32 %v423, 7
    %v425 = vsub.s32 3, %v424
    %v426 = vrot.slane %v412, %v425
    %v427 = vmul.f32 %v324, %v426
    %v428 = vmul.f32 %v422, %v321
    %v429 = vmul.f32 %v427, %v332
    %v430 = vadd.f32 %v428, %v429
    %v431 = vrot.slane %v77, 5
    %v433 = vsub.f32 %v77, %v431
    %v434 = vrcp.pop %v433
    %v435 = vmul.f32 1.0, %v434
    %v436 = vlaneseq
    %v437 = vshrl.u32 %v436, 7
    %v438 = vsub.s32 3, %v437
    %v439 = vrot.slane %v435, %v438
    %v440 = vmul.f32 %v210, %v439
    %v441 = vlaneseq
    %v442 = vshrl.u32 %v441, 7
    %v443 = vsub.s32 4, %v442
    %v444 = vrot.slane %v435, %v443
    %v445 = vmul.f32 %v238, %v444
    %v446 = vmul.f32 %v440, %v350
    %v447 = vmul.f32 %v445, %v359
    %v448 = vadd.f32 %v446, %v447
    %v449 = vmul.f32 %v225, %v444
    %v450 = vlaneseq
    %v451 = vshrl.u32 %v450, 7
    %v452 = vsub.s32 5, %v451
    %v453 = vrot.slane %v435, %v452
    %v454 = vmul.f32 %v249, %v453
    %v455 = vmul.f32 %v449, %v359
    %v456 = vmul.f32 %v454, %v368
    %v457 = vadd.f32 %v455, %v456
    %v458 = vmul.f32 %v236, %v453
    %v459 = vlaneseq
    %v460 = vshrl.u32 %v459, 7
    %v461 = vsub.s32 6, %v460
    %v462 = vrot.slane %v435, %v461
    %v463 = vmul.f32 %v260, %v462
    %v464 = vmul.f32 %v458, %v368
    %v465 = vmul.f32 %v463, %v377
    %v466 = vadd.f32 %v464, %v465
    %v467 = vmul.f32 %v247, %v462
    %v468 = vlaneseq
    %v469 = vshrl.u32 %v468, 7
    %v470 = vsub.s32 7, %v469
    %v471 = vrot.slane %v435, %v470
    %v472 = vmul.f32 %v271, %v471
    %v473 = vmul.f32 %v467, %v377
    %v474 = vmul.f32 %v472, %v386
    %v475 = vadd.f32 %v473, %v474
    %v476 = vsub.f32 %v78, %v431
    %v477 = vrcp.pop %v476
    %v478 = vmul.f32 1.0, %v477
    %v479 = vmul.f32 %v258, %v471
    %v480 = vlaneseq
    %v481 = vshrl.u32 %v480, 7
    %v482 = vsub.s32 0, %v481
    %v483 = vrot.slane %v478, %v482
    %v484 = vmul.f32 %v285, %v483
    %v485 = vmul.f32 %v479, %v386
    %v486 = vmul.f32 %v484, %v398
    %v487 = vadd.f32 %v485, %v486
    %v488 = vmul.f32 %v269, %v483
    %v489 = vlaneseq
    %v490 = vshrl.u32 %v489, 7
    %v491 = vsub.s32 1, %v490
    %v492 = vrot.slane %v478, %v491
    %v493 = vmul.f32 %v302, %v492
    %v494 = vmul.f32 %v488, %v398
    %v495 = vmul.f32 %v493, %v407
    %v496 = vadd.f32 %v494, %v495
    %v497 = vmul.f32 %v283, %v492
    %v498 = vlaneseq
    %v499 = vshrl.u32 %v498, 7
    %v500 = vsub.s32 2, %v499
    %v501 = vrot.slane %v478, %v500
    %v502 = vmul.f32 %v313, %v501
    %v503 = vmul.f32 %v497, %v407
    %v504 = vmul.f32 %v502, %v421
    %v505 = vadd.f32 %v503, %v504
    %v506 = vrot.slane %v78, 5
    %v508 = vsub.f32 %v78, %v506
    %v509 = vrcp.pop %v508
    %v510 = vmul.f32 1.0, %v509
    %v511 = vmul.f32 %v300, %v501
    %v512 = vlaneseq
    %v513 = vshrl.u32 %v512, 7
    %v514 = vsub.s32 3, %v513
    %v515 = vrot.slane %v510, %v514
    %v516 = vmul.f32 %v324, %v515
    %v517 = vmul.f32 %v511, %v421
    %v518 = vmul.f32 %v516, %v430
    %v519 = vadd.f32 %v517, %v518
    %v520 = vld [vmem:[#allocation9] sm:$0xff]
    %v521 = vld [vmem:[#allocation9 + $0x8] sm:$0xff]
    %v522 = vld [vmem:[#allocation9 + $0x10] sm:$0xff]
    %v523 = vld [vmem:[#allocation9 + $0x18] sm:$0xff]
    %v524 = vld [vmem:[#allocation9 + $0x20] sm:$0xff]
    %v525 = vld [vmem:[#allocation9 + $0x28] sm:$0xff]
    %v526 = vld [vmem:[#allocation9 + $0x30] sm:$0xff]
    %v527 = vld [vmem:[#allocation9 + $0x38] sm:$0xff]
    %v528 = vld [vmem:[#allocation9 + $0x40] sm:$0xff]
    %v529 = vld [vmem:[#allocation9 + $0x48] sm:$0xff]
    %v530 = vld [vmem:[#allocation9 + $0x50] sm:$0xff]
    %v531 = vld [vmem:[#allocation9 + $0x58] sm:$0xff]
    %v532 = vld [vmem:[#allocation9 + $0x60] sm:$0xff]
    %v533 = vld [vmem:[#allocation9 + $0x68] sm:$0xff]
    %v534 = vld [vmem:[#allocation9 + $0x70] sm:$0xff]
    %v535 = vld [vmem:[#allocation9 + $0x78] sm:$0xff]
    %v536 = vld [vmem:[#allocation9 + $0x80] sm:$0xff]
    %v537 = vld [vmem:[#allocation9 + $0x88] sm:$0xff]
    %v538 = vld [vmem:[#allocation9 + $0x90] sm:$0xff]
    %v539 = vld [vmem:[#allocation9 + $0x98] sm:$0xff]
    %v540 = vld [vmem:[#allocation9 + $0xa0] sm:$0xff]
    %v541 = vld [vmem:[#allocation9 + $0xa8] sm:$0xff]
    %v542 = vld [vmem:[#allocation9 + $0xb0] sm:$0xff]
    %v543 = vld [vmem:[#allocation9 + $0xb8] sm:$0xff]
    %v544 = vld [vmem:[#allocation9 + $0xc0] sm:$0xff]
    %v545 = vld [vmem:[#allocation9 + $0xc8] sm:$0xff]
    %v546 = vld [vmem:[#allocation9 + $0xd0] sm:$0xff]
    %v547 = vld [vmem:[#allocation9 + $0xd8] sm:$0xff]
    %v548 = vld [vmem:[#allocation9 + $0xe0] sm:$0xff]
    %v549 = vld [vmem:[#allocation9 + $0xe8] sm:$0xff]
    %v550 = vld [vmem:[#allocation9 + $0xf0] sm:$0xff]
    %v551 = vld [vmem:[#allocation9 + $0xf8] sm:$0xff]
    %v552 = vld [vmem:[#allocation9 + $0x100] sm:$0xff]
    %v553 = vld [vmem:[#allocation9 + $0x108] sm:$0xff]
    %v554 = vld [vmem:[#allocation9 + $0x110] sm:$0xff]
    %v555 = vld [vmem:[#allocation9 + $0x118] sm:$0xff]
    %v556 = vld [vmem:[#allocation9 + $0x120] sm:$0xff]
    %v557 = vld [vmem:[#allocation9 + $0x128] sm:$0xff]
    %v558 = vld [vmem:[#allocation9 + $0x130] sm:$0xff]
    %v559 = vld [vmem:[#allocation9 + $0x138] sm:$0xff]
    %v560 = vld [vmem:[#allocation9 + $0x140] sm:$0xff]
    %v561 = vld [vmem:[#allocation9 + $0x148] sm:$0xff]
    %v562 = vld [vmem:[#allocation9 + $0x150] sm:$0xff]
    %v563 = vld [vmem:[#allocation9 + $0x158] sm:$0xff]
    %v564 = vld [vmem:[#allocation9 + $0x160] sm:$0xff]
    %v565 = vld [vmem:[#allocation9 + $0x168] sm:$0xff]
    %v566 = vld [vmem:[#allocation9 + $0x170] sm:$0xff]
    %v567 = vld [vmem:[#allocation9 + $0x178] sm:$0xff]
    %v568 = vld [vmem:[#allocation9 + $0x180] sm:$0xff]
    %v569 = vld [vmem:[#allocation9 + $0x188] sm:$0xff]
    %v570 = vld [vmem:[#allocation9 + $0x190] sm:$0xff]
    %v571 = vld [vmem:[#allocation9 + $0x198] sm:$0xff]
    %v572 = vld [vmem:[#allocation9 + $0x1a0] sm:$0xff]
    %v573 = vld [vmem:[#allocation9 + $0x1a8] sm:$0xff]
    %v574 = vld [vmem:[#allocation9 + $0x1b0] sm:$0xff]
    %v575 = vld [vmem:[#allocation9 + $0x1b8] sm:$0xff]
    %v576 = vld [vmem:[#allocation9 + $0x1c0] sm:$0xff]
    %v577 = vld [vmem:[#allocation9 + $0x1c8] sm:$0xff]
    %v578 = vld [vmem:[#allocation9 + $0x1d0] sm:$0xff]
    %v579 = vld [vmem:[#allocation9 + $0x1d8] sm:$0xff]
    %v580 = vld [vmem:[#allocation9 + $0x1e0] sm:$0xff]
    %v581 = vld [vmem:[#allocation9 + $0x1e8] sm:$0xff]
    %v582 = vld [vmem:[#allocation9 + $0x1f0] sm:$0xff]
    %v583 = vld [vmem:[#allocation9 + $0x1f8] sm:$0xff]
    %v584 = vld [vmem:[#allocation9 + $0x200] sm:$0xff]
    %v585 = vld [vmem:[#allocation9 + $0x208] sm:$0xff]
    %v586 = vld [vmem:[#allocation9 + $0x210] sm:$0xff]
    %v587 = vld [vmem:[#allocation9 + $0x218] sm:$0xff]
    %v588 = vld [vmem:[#allocation9 + $0x220] sm:$0xff]
    %v589 = vld [vmem:[#allocation9 + $0x228] sm:$0xff]
    %v590 = vld [vmem:[#allocation9 + $0x230] sm:$0xff]
    %v591 = vld [vmem:[#allocation9 + $0x238] sm:$0xff]
    %v592 = vld [vmem:[#allocation9 + $0x240] sm:$0xff]
    %v593 = vld [vmem:[#allocation9 + $0x248] sm:$0xff]
    %v594 = vld [vmem:[#allocation9 + $0x250] sm:$0xff]
    %v595 = vld [vmem:[#allocation9 + $0x258] sm:$0xff]
    %v596 = vld [vmem:[#allocation9 + $0x260] sm:$0xff]
    %v597 = vld [vmem:[#allocation9 + $0x268] sm:$0xff]
    %v598 = vld [vmem:[#allocation9 + $0x270] sm:$0xff]
    %v599 = vld [vmem:[#allocation9 + $0x278] sm:$0xff]
    %v600 = vld [vmem:[#allocation9 + $0x280] sm:$0xff]
    %v601 = vld [vmem:[#allocation9 + $0x288] sm:$0xff]
    %v602 = vld [vmem:[#allocation9 + $0x290] sm:$0xff]
    %v603 = vld [vmem:[#allocation9 + $0x298] sm:$0xff]
    %v604 = vld [vmem:[#allocation9 + $0x2a0] sm:$0xff]
    %v605 = vld [vmem:[#allocation9 + $0x2a8] sm:$0xff]
    %v606 = vld [vmem:[#allocation9 + $0x2b0] sm:$0xff]
    %v607 = vld [vmem:[#allocation9 + $0x2b8] sm:$0xff]
    %v608 = vld [vmem:[#allocation9 + $0x2c0] sm:$0xff]
    %v609 = vld [vmem:[#allocation9 + $0x2c8] sm:$0xff]
    %v610 = vld [vmem:[#allocation9 + $0x2d0] sm:$0xff]
    %v611 = vld [vmem:[#allocation9 + $0x2d8] sm:$0xff]
    %v612 = vld [vmem:[#allocation9 + $0x2e0] sm:$0xff]
    %v613 = vld [vmem:[#allocation9 + $0x2e8] sm:$0xff]
    %v614 = vld [vmem:[#allocation9 + $0x2f0] sm:$0xff]
    %v615 = vld [vmem:[#allocation9 + $0x2f8] sm:$0xff]
    %v616 = vld [vmem:[#allocation9 + $0x300] sm:$0xff]
    %v617 = vld [vmem:[#allocation9 + $0x308] sm:$0xff]
    %v618 = vld [vmem:[#allocation9 + $0x310] sm:$0xff]
    %v619 = vld [vmem:[#allocation9 + $0x318] sm:$0xff]
    %v620 = vld [vmem:[#allocation9 + $0x320] sm:$0xff]
    %v621 = vld [vmem:[#allocation9 + $0x328] sm:$0xff]
    %v622 = vld [vmem:[#allocation9 + $0x330] sm:$0xff]
    %v623 = vld [vmem:[#allocation9 + $0x338] sm:$0xff]
    %v624 = vld [vmem:[#allocation9 + $0x340] sm:$0xff]
    %v625 = vld [vmem:[#allocation9 + $0x348] sm:$0xff]
    %v626 = vld [vmem:[#allocation9 + $0x350] sm:$0xff]
    %v627 = vld [vmem:[#allocation9 + $0x358] sm:$0xff]
    %v628 = vld [vmem:[#allocation9 + $0x360] sm:$0xff]
    %v629 = vld [vmem:[#allocation9 + $0x368] sm:$0xff]
    %v630 = vld [vmem:[#allocation9 + $0x370] sm:$0xff]
    %v631 = vld [vmem:[#allocation9 + $0x378] sm:$0xff]
    %v632 = vld [vmem:[#allocation9 + $0x380] sm:$0xff]
    %v633 = vld [vmem:[#allocation9 + $0x388] sm:$0xff]
    %v634 = vld [vmem:[#allocation9 + $0x390] sm:$0xff]
    %v635 = vld [vmem:[#allocation9 + $0x398] sm:$0xff]
    %v636 = vld [vmem:[#allocation9 + $0x3a0] sm:$0xff]
    %v637 = vld [vmem:[#allocation9 + $0x3a8] sm:$0xff]
    %v638 = vld [vmem:[#allocation9 + $0x3b0] sm:$0xff]
    %v639 = vld [vmem:[#allocation9 + $0x3b8] sm:$0xff]
    %v640 = vld [vmem:[#allocation9 + $0x3c0] sm:$0xff]
    %v641 = vld [vmem:[#allocation9 + $0x3c8] sm:$0xff]
    %v642 = vld [vmem:[#allocation9 + $0x3d0] sm:$0xff]
    %v643 = vld [vmem:[#allocation9 + $0x3d8] sm:$0xff]
    %v644 = vld [vmem:[#allocation9 + $0x3e0] sm:$0xff]
    %v645 = vld [vmem:[#allocation9 + $0x3e8] sm:$0xff]
    %v646 = vld [vmem:[#allocation9 + $0x3f0] sm:$0xff]
    %v647 = vld [vmem:[#allocation9 + $0x3f8] sm:$0xff]
    %648 = vmatprep.subr.mxu0 0.0
    %649 = vmatpush1.msra.mxu0 %v535
    %650 = vmatprep.subr.mxu0 0.0
    %651 = vmatpush1.msra.mxu0 %v534
    %652 = vmatprep.subr.mxu0 0.0
    %653 = vmatpush1.msra.mxu0 %v533
    %654 = vmatprep.subr.mxu0 0.0
    %655 = vmatpush1.msra.mxu0 %v532
    %656 = vmatprep.subr.mxu0 0.0
    %657 = vmatpush1.msra.mxu0 %v531
    %658 = vmatprep.subr.mxu0 0.0
    %659 = vmatpush1.msra.mxu0 %v530
    %660 = vmatprep.subr.mxu0 0.0
    %661 = vmatpush1.msra.mxu0 %v529
    %662 = vmatprep.subr.mxu0 0.0
    %663 = vmatpush1.msra.mxu0 %v528
    %664 = vmatprep.subr.mxu0 0.0
    %665 = vmatpush1.msra.mxu0 %v527
    %666 = vmatprep.subr.mxu0 0.0
    %667 = vmatpush1.msra.mxu0 %v526
    %668 = vmatprep.subr.mxu0 0.0
    %669 = vmatpush1.msra.mxu0 %v525
    %670 = vmatprep.subr.mxu0 0.0
    %671 = vmatpush1.msra.mxu0 %v524
    %672 = vmatprep.subr.mxu0 0.0
    %673 = vmatpush1.msra.mxu0 %v523
    %674 = vmatprep.subr.mxu0 0.0
    %675 = vmatpush1.msra.mxu0 %v522
    %676 = vmatprep.subr.mxu0 0.0
    %677 = vmatpush1.msra.mxu0 %v521
    %678 = vmatprep.subr.mxu0 0.0
    %679 = vmatpush1.msra.mxu0 %v520
    %680 = vmatprep.subr.mxu0 0.0
    %681 = vmatpush2.msra.mxu0 %v551
    %682 = vmatprep.subr.mxu0 0.0
    %683 = vmatpush2.msra.mxu0 %v550
    %684 = vmatprep.subr.mxu0 0.0
    %685 = vmatpush2.msra.mxu0 %v549
    %686 = vmatprep.subr.mxu0 0.0
    %687 = vmatpush2.msra.mxu0 %v548
    %688 = vmatprep.subr.mxu0 0.0
    %689 = vmatpush2.msra.mxu0 %v547
    %690 = vmatprep.subr.mxu0 0.0
    %691 = vmatpush2.msra.mxu0 %v546
    %692 = vmatprep.subr.mxu0 0.0
    %693 = vmatpush2.msra.mxu0 %v545
    %694 = vmatprep.subr.mxu0 0.0
    %695 = vmatpush2.msra.mxu0 %v544
    %696 = vmatprep.subr.mxu0 0.0
    %697 = vmatpush2.msra.mxu0 %v543
    %698 = vmatprep.subr.mxu0 0.0
    %699 = vmatpush2.msra.mxu0 %v542
    %700 = vmatprep.subr.mxu0 0.0
    %701 = vmatpush2.msra.mxu0 %v541
    %702 = vmatprep.subr.mxu0 0.0
    %703 = vmatpush2.msra.mxu0 %v540
    %704 = vmatprep.subr.mxu0 0.0
    %705 = vmatpush2.msra.mxu0 %v539
    %706 = vmatprep.subr.mxu0 0.0
    %707 = vmatpush2.msra.mxu0 %v538
    %708 = vmatprep.subr.mxu0 0.0
    %709 = vmatpush2.msra.mxu0 %v537
    %710 = vmatprep.subr.mxu0 0.0
    %711 = vmatpush2.msra.mxu0 %v536
    %712 = vmatprep.mubr.f32.mxu0 %v457
    %713 = vmatmul.mubr.f32.gmra.mxu0 %v448
    %v714 = vpop.f32.mrf.mxu0
    %v715 = vadd.f32 0.0, %v714
    %v716 = vpop.f32.mrf.mxu0
    %717 = vdwg.mxu0
    %718 = vmatprep.subr.mxu0 0.0
    %719 = vmatpush1.msra.mxu0 %v567
    %720 = vmatprep.subr.mxu0 0.0
    %721 = vmatpush1.msra.mxu0 %v566
    %722 = vmatprep.subr.mxu0 0.0
    %723 = vmatpush1.msra.mxu0 %v565
    %724 = vmatprep.subr.mxu0 0.0
    %725 = vmatpush1.msra.mxu0 %v564
    %726 = vmatprep.subr.mxu0 0.0
    %727 = vmatpush1.msra.mxu0 %v563
    %728 = vmatprep.subr.mxu0 0.0
    %729 = vmatpush1.msra.mxu0 %v562
    %730 = vmatprep.subr.mxu0 0.0
    %731 = vmatpush1.msra.mxu0 %v561
    %732 = vmatprep.subr.mxu0 0.0
    %733 = vmatpush1.msra.mxu0 %v560
    %734 = vmatprep.subr.mxu0 0.0
    %735 = vmatpush1.msra.mxu0 %v559
    %736 = vmatprep.subr.mxu0 0.0
    %737 = vmatpush1.msra.mxu0 %v558
    %738 = vmatprep.subr.mxu0 0.0
    %739 = vmatpush1.msra.mxu0 %v557
    %740 = vmatprep.subr.mxu0 0.0
    %741 = vmatpush1.msra.mxu0 %v556
    %742 = vmatprep.subr.mxu0 0.0
    %743 = vmatpush1.msra.mxu0 %v555
    %744 = vmatprep.subr.mxu0 0.0
    %745 = vmatpush1.msra.mxu0 %v554
    %746 = vmatprep.subr.mxu0 0.0
    %747 = vmatpush1.msra.mxu0 %v553
    %748 = vmatprep.subr.mxu0 0.0
    %749 = vmatpush1.msra.mxu0 %v552
    %750 = vmatprep.subr.mxu0 0.0
    %751 = vmatpush2.msra.mxu0 %v583
    %752 = vmatprep.subr.mxu0 0.0
    %753 = vmatpush2.msra.mxu0 %v582
    %754 = vmatprep.subr.mxu0 0.0
    %755 = vmatpush2.msra.mxu0 %v581
    %756 = vmatprep.subr.mxu0 0.0
    %757 = vmatpush2.msra.mxu0 %v580
    %758 = vmatprep.subr.mxu0 0.0
    %759 = vmatpush2.msra.mxu0 %v579
    %760 = vmatprep.subr.mxu0 0.0
    %761 = vmatpush2.msra.mxu0 %v578
    %762 = vmatprep.subr.mxu0 0.0
    %763 = vmatpush2.msra.mxu0 %v577
    %764 = vmatprep.subr.mxu0 0.0
    %765 = vmatpush2.msra.mxu0 %v576
    %766 = vmatprep.subr.mxu0 0.0
    %767 = vmatpush2.msra.mxu0 %v575
    %768 = vmatprep.subr.mxu0 0.0
    %769 = vmatpush2.msra.mxu0 %v574
    %770 = vmatprep.subr.mxu0 0.0
    %771 = vmatpush2.msra.mxu0 %v573
    %772 = vmatprep.subr.mxu0 0.0
    %773 = vmatpush2.msra.mxu0 %v572
    %774 = vmatprep.subr.mxu0 0.0
    %775 = vmatpush2.msra.mxu0 %v571
    %776 = vmatprep.subr.mxu0 0.0
    %777 = vmatpush2.msra.mxu0 %v570
    %778 = vmatprep.subr.mxu0 0.0
    %779 = vmatpush2.msra.mxu0 %v569
    %780 = vmatprep.subr.mxu0 0.0
    %781 = vmatpush2.msra.mxu0 %v568
    %782 = vmatprep.mubr.f32.mxu0 %v475
    %783 = vmatmul.mubr.f32.gmra.mxu0 %v466
    %v784 = vpop.f32.mrf.mxu0
    %v785 = vadd.f32 %v715, %v784
    %v786 = vpop.f32.mrf.mxu0
    %787 = vdwg.mxu0
    %788 = vmatprep.subr.mxu0 0.0
    %789 = vmatpush1.msra.mxu0 %v599
    %790 = vmatprep.subr.mxu0 0.0
    %791 = vmatpush1.msra.mxu0 %v598
    %792 = vmatprep.subr.mxu0 0.0
    %793 = vmatpush1.msra.mxu0 %v597
    %794 = vmatprep.subr.mxu0 0.0
    %795 = vmatpush1.msra.mxu0 %v596
    %796 = vmatprep.subr.mxu0 0.0
    %797 = vmatpush1.msra.mxu0 %v595
    %798 = vmatprep.subr.mxu0 0.0
    %799 = vmatpush1.msra.mxu0 %v594
    %800 = vmatprep.subr.mxu0 0.0
    %801 = vmatpush1.msra.mxu0 %v593
    %802 = vmatprep.subr.mxu0 0.0
    %803 = vmatpush1.msra.mxu0 %v592
    %804 = vmatprep.subr.mxu0 0.0
    %805 = vmatpush1.msra.mxu0 %v591
    %806 = vmatprep.subr.mxu0 0.0
    %807 = vmatpush1.msra.mxu0 %v590
    %808 = vmatprep.subr.mxu0 0.0
    %809 = vmatpush1.msra.mxu0 %v589
    %810 = vmatprep.subr.mxu0 0.0
    %811 = vmatpush1.msra.mxu0 %v588
    %812 = vmatprep.subr.mxu0 0.0
    %813 = vmatpush1.msra.mxu0 %v587
    %814 = vmatprep.subr.mxu0 0.0
    %815 = vmatpush1.msra.mxu0 %v586
    %816 = vmatprep.subr.mxu0 0.0
    %817 = vmatpush1.msra.mxu0 %v585
    %818 = vmatprep.subr.mxu0 0.0
    %819 = vmatpush1.msra.mxu0 %v584
    %820 = vmatprep.subr.mxu0 0.0
    %821 = vmatpush2.msra.mxu0 %v615
    %822 = vmatprep.subr.mxu0 0.0
    %823 = vmatpush2.msra.mxu0 %v614
    %824 = vmatprep.subr.mxu0 0.0
    %825 = vmatpush2.msra.mxu0 %v613
    %826 = vmatprep.subr.mxu0 0.0
    %827 = vmatpush2.msra.mxu0 %v612
    %828 = vmatprep.subr.mxu0 0.0
    %829 = vmatpush2.msra.mxu0 %v611
    %830 = vmatprep.subr.mxu0 0.0
    %831 = vmatpush2.msra.mxu0 %v610
    %832 = vmatprep.subr.mxu0 0.0
    %833 = vmatpush2.msra.mxu0 %v609
    %834 = vmatprep.subr.mxu0 0.0
    %835 = vmatpush2.msra.mxu0 %v608
    %836 = vmatprep.subr.mxu0 0.0
    %837 = vmatpush2.msra.mxu0 %v607
    %838 = vmatprep.subr.mxu0 0.0
    %839 = vmatpush2.msra.mxu0 %v606
    %840 = vmatprep.subr.mxu0 0.0
    %841 = vmatpush2.msra.mxu0 %v605
    %842 = vmatprep.subr.mxu0 0.0
    %843 = vmatpush2.msra.mxu0 %v604
    %844 = vmatprep.subr.mxu0 0.0
    %845 = vmatpush2.msra.mxu0 %v603
    %846 = vmatprep.subr.mxu0 0.0
    %847 = vmatpush2.msra.mxu0 %v602
    %848 = vmatprep.subr.mxu0 0.0
    %849 = vmatpush2.msra.mxu0 %v601
    %850 = vmatprep.subr.mxu0 0.0
    %851 = vmatpush2.msra.mxu0 %v600
    %852 = vmatprep.mubr.f32.mxu0 %v496
    %853 = vmatmul.mubr.f32.gmra.mxu0 %v487
    %v854 = vpop.f32.mrf.mxu0
    %v855 = vadd.f32 %v785, %v854
    %v856 = vpop.f32.mrf.mxu0
    %857 = vdwg.mxu0
    %858 = vmatprep.subr.mxu0 0.0
    %859 = vmatpush1.msra.mxu0 %v631
    %860 = vmatprep.subr.mxu0 0.0
    %861 = vmatpush1.msra.mxu0 %v630
    %862 = vmatprep.subr.mxu0 0.0
    %863 = vmatpush1.msra.mxu0 %v629
    %864 = vmatprep.subr.mxu0 0.0
    %865 = vmatpush1.msra.mxu0 %v628
    %866 = vmatprep.subr.mxu0 0.0
    %867 = vmatpush1.msra.mxu0 %v627
    %868 = vmatprep.subr.mxu0 0.0
    %869 = vmatpush1.msra.mxu0 %v626
    %870 = vmatprep.subr.mxu0 0.0
    %871 = vmatpush1.msra.mxu0 %v625
    %872 = vmatprep.subr.mxu0 0.0
    %873 = vmatpush1.msra.mxu0 %v624
    %874 = vmatprep.subr.mxu0 0.0
    %875 = vmatpush1.msra.mxu0 %v623
    %876 = vmatprep.subr.mxu0 0.0
    %877 = vmatpush1.msra.mxu0 %v622
    %878 = vmatprep.subr.mxu0 0.0
    %879 = vmatpush1.msra.mxu0 %v621
    %880 = vmatprep.subr.mxu0 0.0
    %881 = vmatpush1.msra.mxu0 %v620
    %882 = vmatprep.subr.mxu0 0.0
    %883 = vmatpush1.msra.mxu0 %v619
    %884 = vmatprep.subr.mxu0 0.0
    %885 = vmatpush1.msra.mxu0 %v618
    %886 = vmatprep.subr.mxu0 0.0
    %887 = vmatpush1.msra.mxu0 %v617
    %888 = vmatprep.subr.mxu0 0.0
    %889 = vmatpush1.msra.mxu0 %v616
    %890 = vmatprep.subr.mxu0 0.0
    %891 = vmatpush2.msra.mxu0 %v647
    %892 = vmatprep.subr.mxu0 0.0
    %893 = vmatpush2.msra.mxu0 %v646
    %894 = vmatprep.subr.mxu0 0.0
    %895 = vmatpush2.msra.mxu0 %v645
    %896 = vmatprep.subr.mxu0 0.0
    %897 = vmatpush2.msra.mxu0 %v644
    %898 = vmatprep.subr.mxu0 0.0
    %899 = vmatpush2.msra.mxu0 %v643
    %900 = vmatprep.subr.mxu0 0.0
    %901 = vmatpush2.msra.mxu0 %v642
    %902 = vmatprep.subr.mxu0 0.0
    %903 = vmatpush2.msra.mxu0 %v641
    %904 = vmatprep.subr.mxu0 0.0
    %905 = vmatpush2.msra.mxu0 %v640
    %906 = vmatprep.subr.mxu0 0.0
    %907 = vmatpush2.msra.mxu0 %v639
    %908 = vmatprep.subr.mxu0 0.0
    %909 = vmatpush2.msra.mxu0 %v638
    %910 = vmatprep.subr.mxu0 0.0
    %911 = vmatpush2.msra.mxu0 %v637
    %912 = vmatprep.subr.mxu0 0.0
    %913 = vmatpush2.msra.mxu0 %v636
    %914 = vmatprep.subr.mxu0 0.0
    %915 = vmatpush2.msra.mxu0 %v635
    %916 = vmatprep.subr.mxu0 0.0
    %917 = vmatpush2.msra.mxu0 %v634
    %918 = vmatprep.subr.mxu0 0.0
    %919 = vmatpush2.msra.mxu0 %v633
    %920 = vmatprep.subr.mxu0 0.0
    %921 = vmatpush2.msra.mxu0 %v632
    %922 = vmatprep.mubr.f32.mxu0 %v519
    %923 = vmatmul.mubr.f32.gmra.mxu0 %v505
    %v924 = vpop.f32.mrf.mxu0
    %v925 = vadd.f32 %v855, %v924
    %v926 = vpop.f32.mrf.mxu0
    %927 = vdwg.mxu0
    %928 = vmatprep.subr.mxu0 0.0
    %929 = vmatpush1.msra.mxu0 %v94
    %930 = vmatprep.subr.mxu0 0.0
    %931 = vmatpush1.msra.mxu0 %v93
    %932 = vmatprep.subr.mxu0 0.0
    %933 = vmatpush1.msra.mxu0 %v92
    %934 = vmatprep.subr.mxu0 0.0
    %935 = vmatpush1.msra.mxu0 %v91
    %936 = vmatprep.subr.mxu0 0.0
    %937 = vmatpush1.msra.mxu0 %v90
    %938 = vmatprep.subr.mxu0 0.0
    %939 = vmatpush1.msra.mxu0 %v89
    %940 = vmatprep.subr.mxu0 0.0
    %941 = vmatpush1.msra.mxu0 %v88
    %942 = vmatprep.subr.mxu0 0.0
    %943 = vmatpush1.msra.mxu0 %v87
    %944 = vmatprep.subr.mxu0 0.0
    %945 = vmatpush1.msra.mxu0 %v86
    %946 = vmatprep.subr.mxu0 0.0
    %947 = vmatpush1.msra.mxu0 %v85
    %948 = vmatprep.subr.mxu0 0.0
    %949 = vmatpush1.msra.mxu0 %v84
    %950 = vmatprep.subr.mxu0 0.0
    %951 = vmatpush1.msra.mxu0 %v83
    %952 = vmatprep.subr.mxu0 0.0
    %953 = vmatpush1.msra.mxu0 %v82
    %954 = vmatprep.subr.mxu0 0.0
    %955 = vmatpush1.msra.mxu0 %v81
    %956 = vmatprep.subr.mxu0 0.0
    %957 = vmatpush1.msra.mxu0 %v80
    %958 = vmatprep.subr.mxu0 0.0
    %959 = vmatpush1.msra.mxu0 %v79
    %960 = vmatprep.subr.mxu0 0.0
    %961 = vmatpush2.msra.mxu0 0.0
    %962 = vmatprep.subr.mxu0 0.0
    %963 = vmatpush2.msra.mxu0 0.0
    %964 = vmatprep.subr.mxu0 0.0
    %965 = vmatpush2.msra.mxu0 0.0
    %966 = vmatprep.subr.mxu0 0.0
    %967 = vmatpush2.msra.mxu0 0.0
    %968 = vmatprep.subr.mxu0 0.0
    %969 = vmatpush2.msra.mxu0 0.0
    %970 = vmatprep.subr.mxu0 0.0
    %971 = vmatpush2.msra.mxu0 0.0
    %972 = vmatprep.subr.mxu0 0.0
    %973 = vmatpush2.msra.mxu0 0.0
    %974 = vmatprep.subr.mxu0 0.0
    %975 = vmatpush2.msra.mxu0 0.0
    %976 = vmatprep.subr.mxu0 0.0
    %977 = vmatpush2.msra.mxu0 0.0
    %978 = vmatprep.subr.mxu0 0.0
    %979 = vmatpush2.msra.mxu0 0.0
    %980 = vmatprep.subr.mxu0 0.0
    %981 = vmatpush2.msra.mxu0 0.0
    %982 = vmatprep.subr.mxu0 0.0
    %983 = vmatpush2.msra.mxu0 0.0
    %984 = vmatprep.subr.mxu0 0.0
    %985 = vmatpush2.msra.mxu0 0.0
    %986 = vmatprep.subr.mxu0 0.0
    %987 = vmatpush2.msra.mxu0 0.0
    %988 = vmatprep.subr.mxu0 0.0
    %989 = vmatpush2.msra.mxu0 0.0
    %990 = vmatprep.subr.mxu0 0.0
    %991 = vmatpush2.msra.mxu0 0.0
    %992 = vmatprep.mubr.f32.mxu0 0.0
    %993 = vmatmul.mubr.f32.gmra.mxu0 %v100
    %v994 = vpop.f32.mrf.mxu0
    %v995 = vadd.f32 %v925, %v994
    %v996 = vpop.f32.mrf.mxu0
    %997 = vdwg.mxu0
    %v998 = vld [vmem:[#allocation2] sm:$0xff]
    %v999 = vadd.f32 %v998, %v995
    %1000 = vst [vmem:[#allocation2] sm:$0xff] %v999
    // Predicated region
    $region38: #{tpu_custom_call.1} parent=1 // pred_check
      %p1001 = pneg %p71
    $region39: #{tpu_custom_call.1} parent=1 // pred_check_branch
      %1003 = sbr.rel (%p1001) target = $region41
    $region40: #{tpu_custom_call.1} parent=1 // pred_region
      %v1004 = vld [vmem:[#allocation2] sm:$0xff]
      %1005 = vst [vmem:[#allocation11] sm:$0xff] %v1004
    $region41: #{tpu_custom_call.1} parent=1 // pred_fallthru
      _
    // Predicated region
    $region42: #{tpu_custom_call.1} parent=1 // pred_check
      _
    $region43: #{tpu_custom_call.1} parent=1 // pred_check_branch
      %1007 = sbr.rel (0) target = $region45
    $region44: #{tpu_custom_call.1} parent=1 // pred_region
      %s1009 = ssub.s32 128, 128
      %1010 = vsyncadd [#allocation5], %s1009
      %s1012 = sshll.u32 [#allocation11], 4
      %s1013 = int_to_ptr.vmem [resolvable:$true] %s1012
      %1015 = dma.vmem_to_hbm [thread:$0]  %s1013, 128, %s4, [#allocation5]
    $region45: #{tpu_custom_call.1} parent=1 // pred_fallthru
      _
    // Predicated region
    $region46: #{tpu_custom_call.1} parent=1 // pred_check
      _
    $region47: #{tpu_custom_call.1} parent=1 // pred_check_branch
      %1017 = sbr.rel (0) target = $region49
    $region48: #{tpu_custom_call.1} parent=1 // pred_region
      %1018 = dma.done [#allocation5], 128
    $region49: #{tpu_custom_call.1} parent=1 // pred_fallthru
      _
    %1019 = vsyncpa [#allocation4], 1
    %1020 = vsyncpa [#allocation7], 1
    %1021 = vsyncpa [#allocation10], 1
    %1022 = vsyncpa [#allocation5], 1

</llo_original>
